<compile_context>
chip_gen: v7x
topology: tpu7x:2x2x1
jax: 0.10.0
libtpu: 0.0.40
codegen_flags: <defaults>
</compile_context>

<pallas_src>
import jax
import jax.numpy as jnp
from jax import lax
from jax.experimental import pallas as pl
from jax.experimental.pallas import tpu as pltpu

LANES = 128        # all activations / weight output dims padded to 128 lanes (lane-dense)
KPAD = 128         # weight fan-in rows padded to 128 -> unmasked (8,128)-aligned slab reads
N_WEIGHTS = 12     # 3 layers x (w1d, w1s, w2, w3)
N_BIAS_ROWS = 16   # 9 biases + bn gamma + bn beta, padded to 16 rows
BN_GAMMA_ROW = 9
BN_BETA_ROW = 10


def _vmem_spec():
    return pl.BlockSpec(memory_space=pltpu.MemorySpace.VMEM)


# ---------------------------------------------------------------------------
# Fused forward kernel
# ---------------------------------------------------------------------------
def fused_kernel(eidx_ref, x_ref, w_ref, b_ref, o_ref):
    N = x_ref.shape[0]        # nodes   (multiple of 8)
    E = eidx_ref.shape[0]     # edges   (multiple of 8)

    def w_blk(i):             # full-tile, unmasked [128, 128] bf16 read from the slab
        return w_ref[i * KPAD:(i + 1) * KPAD, :]

    biases = b_ref[...]       # [16, 128] f32, one parameter vector per row

    # ---- BatchNorm1d (training-mode batch statistics), two-pass variance ----
    x = x_ref[...]                                          # [N, 128] f32, zero-padded lanes
    gamma = biases[BN_GAMMA_ROW:BN_GAMMA_ROW + 1, :]        # 0 in padded lanes
    beta = biases[BN_BETA_ROW:BN_BETA_ROW + 1, :]
    mean = jnp.mean(x, axis=0, keepdims=True)
    cen = x - mean
    var = jnp.mean(cen * cen, axis=0, keepdims=True)        # biased var, like torch BN fwd
    x = cen * (gamma * lax.rsqrt(var + 1e-5)) + beta        # padded lanes stay exactly 0

    # ---- selection matrix built ONCE, exact 0/1, bf16 MXU operand ----
    eidx = eidx_ref[...]                                    # [E, 8] i32: col0=dst(i), col1=src(j)
    dst_col = eidx[:, 0:1]
    src_col = eidx[:, 1:2]
    lane = lax.broadcasted_iota(jnp.int32, (E, 2 * N), 1)
    # lanes [0,N) pick x_i (dst side), lanes [N,2N) pick x_j (src side)
    s_cat = jnp.logical_or(lane == dst_col,
                           lane == src_col + N).astype(jnp.float32).astype(jnp.bfloat16)

    # in-degree (column-sum of S_dst) via one tiny TN matmul; reciprocal on the EUP.
    ones_e = jnp.ones((E, 8), jnp.bfloat16)
    deg = lax.dot_general(s_cat, ones_e, (((0,), (0,)), ((), ())),
                          preferred_element_type=jnp.float32)[:N, 0:1]     # [N, 1]
    inv_deg = pl.reciprocal(jnp.maximum(deg, 1.0), approx=True)            # 0-deg nodes -> out 0

    def edge_conv(x_nodes, layer, final_relu):
        w1d, w1s = w_blk(4 * layer + 0), w_blk(4 * layer + 1)
        w2, w3 = w_blk(4 * layer + 2), w_blk(4 * layer + 3)
        b1 = biases[3 * layer + 0:3 * layer + 1, :]
        b2 = biases[3 * layer + 1:3 * layer + 2, :]
        b3 = biases[3 * layer + 2:3 * layer + 3, :]

        # message = nn([x_i, x_j - x_i]); first Linear split so the [E, 2C] concat never
        # materializes:  [x_i, x_j - x_i] @ W1 = S_dst @ (x @ (W1a-W1b)) + S_src @ (x @ W1b)
        # and the two gather matmuls are fused into ONE:  h = S_cat @ [[x@w1d],[x@w1s]] + b1
        xb = x_nodes.astype(jnp.bfloat16)
        md = jnp.dot(xb, w1d, preferred_element_type=jnp.float32)          # [N, 128]
        ms = jnp.dot(xb, w1s, preferred_element_type=jnp.float32)          # [N, 128]
        m = jnp.concatenate([md, ms], axis=0).astype(jnp.bfloat16)         # [2N, 128]
        h = jnp.dot(s_cat, m, preferred_element_type=jnp.float32) + b1     # [E, 128]
        h = jnp.maximum(h, 0.0)
        h = jnp.maximum(jnp.dot(h.astype(jnp.bfloat16), w2,
                                preferred_element_type=jnp.float32) + b2, 0.0)
        h = jnp.dot(h.astype(jnp.bfloat16), w3,
                    preferred_element_type=jnp.float32) + b3
        if final_relu:
            h = jnp.maximum(h, 0.0)

        # scatter-mean: A_unnorm @ h == S_dst^T @ h  (TN matmul on s_cat, rows [:N]),
        # then scale by 1/deg on the small [N, 128] result.
        agg = lax.dot_general(s_cat, h.astype(jnp.bfloat16),
                              (((0,), (0,)), ((), ())),
                              preferred_element_type=jnp.float32)[:N, :]   # [N, 128]
        return agg * inv_deg

    x = edge_conv(x, 0, True)     # encoder_nn_1 (ends with ReLU)
    x = edge_conv(x, 1, True)     # encoder_nn_2 (ends with ReLU)
    x = edge_conv(x, 2, False)    # decoder_nn_1 (no final ReLU)
    o_ref[...] = x                # lane-dense [N, 128] f32 store


# ---------------------------------------------------------------------------
# Wrapper
# ---------------------------------------------------------------------------
def edgenet_deeper4_forward(x, edge_index, w_slab, b_slab, out_dim):
    N, C = x.shape
    E = edge_index.shape[1]
    assert N % 8 == 0 and E % 8 == 0, "toy kernel assumes 8-aligned node/edge counts"

    # single sublane-aligned int32 input: col0 = dst (target i), col1 = src (source j)
    eidx = jnp.zeros((E, 8), jnp.int32)
    eidx = eidx.at[:, 0].set(edge_index[1].astype(jnp.int32))
    eidx = eidx.at[:, 1].set(edge_index[0].astype(jnp.int32))

    # node features zero-padded to 128 lanes so every matmul K dim is 128 (no masked slices)
    x_pad = jnp.zeros((N, LANES), jnp.float32).at[:, :C].set(x.astype(jnp.float32))

    out = pl.pallas_call(
        fused_kernel,
        out_shape=jax.ShapeDtypeStruct((N, LANES), jnp.float32),
        in_specs=[_vmem_spec()] * 4,
        out_specs=_vmem_spec(),
    )(eidx, x_pad, w_slab, b_slab)
    return out[:, :out_dim]


# ---------------------------------------------------------------------------
# Deterministic parameter init (torch.nn.Linear-style uniform) + slab packing.
#   weight slab: 12 blocks of [128, 128] bf16 (w1d, w1s, w2, w3 per layer)
#   bias slab  : [16, 128]  f32 (9 biases + BN gamma/beta + padding rows)
# ---------------------------------------------------------------------------
def init_linear(key, fan_in, fan_out):
    kw, kb = jax.random.split(key)
    bound = 1.0 / (fan_in ** 0.5)
    w = jax.random.uniform(kw, (fan_in, fan_out), jnp.float32, -bound, bound)
    b = jax.random.uniform(kb, (1, fan_out), jnp.float32, -bound, bound)
    return w, b


def make_param_slabs(key, input_dim, big_dim, hidden_dim):
    k1, k2, k3 = jax.random.split(key, 3)

    def mlp(k, dims):
        keys = jax.random.split(k, 3)
        return [init_linear(kk, din, dout)
                for kk, (din, dout) in zip(keys, zip(dims[:-1], dims[1:]))]

    enc1 = mlp(k1, [2 * input_dim, big_dim, big_dim, big_dim])             # 8->32->32->32
    enc2 = mlp(k2, [2 * big_dim, big_dim // 2, big_dim // 2, hidden_dim])  # 64->16->16->2
    dec1 = mlp(k3, [2 * hidden_dim, big_dim, big_dim, input_dim])          # 4->32->32->4

    def pad_w(w):
        k, h = w.shape
        return jnp.zeros((KPAD, LANES), jnp.float32).at[:k, :h].set(w)

    def pad_b(b):
        h = b.shape[1]
        return jnp.zeros((1, LANES), jnp.float32).at[:, :h].set(b)

    w_blocks, b_rows = [], []
    for layers, cin in ((enc1, input_dim), (enc2, big_dim), (dec1, hidden_dim)):
        (w1, b1), (w2, b2), (w3, b3) = layers
        w1a, w1b = w1[:cin], w1[cin:]          # x_i part / (x_j - x_i) part of Linear 1
        w_blocks += [pad_w(w1a - w1b), pad_w(w1b), pad_w(w2), pad_w(w3)]
        b_rows += [pad_b(b1), pad_b(b2), pad_b(b3)]

    # BatchNorm1d defaults: gamma=1 on real channels (0 in padded lanes keeps padding at 0)
    gamma = jnp.zeros((1, LANES), jnp.float32).at[:, :input_dim].set(1.0)
    beta = jnp.zeros((1, LANES), jnp.float32)
    b_rows += [gamma, beta]
    while len(b_rows) < N_BIAS_ROWS:
        b_rows.append(jnp.zeros((1, LANES), jnp.float32))

    w_slab = jnp.concatenate(w_blocks, axis=0).astype(jnp.bfloat16)   # [12*128, 128] bf16
    b_slab = jnp.concatenate(b_rows, axis=0)                          # [16, 128] f32
    return w_slab, b_slab


if __name__ == "__main__":
    input_dim, big_dim, hidden_dim = 4, 32, 2
    N, E = 16, 64  # nodes, edges

    key = jax.random.PRNGKey(0)
    kx, ke, kp = jax.random.split(key, 3)

    x = jax.random.normal(kx, (N, input_dim), dtype=jnp.float32)
    edge_index = jax.random.randint(ke, (2, E), 0, N, dtype=jnp.int32)

    w_slab, b_slab = make_param_slabs(kp, input_dim, big_dim, hidden_dim)

    # TODO(synk): BatchNorm running-stat (momentum) update / eval-mode stats not modeled;
    # this kernel implements the training-mode forward like the reference in train().
    out = edgenet_deeper4_forward(x, edge_index, w_slab, b_slab, input_dim)
    jax.block_until_ready(out)
    assert out.shape == (N, input_dim)
    print("KERNEL_OK")
</pallas_src>

<mosaic_0001>
module attributes {stable_mosaic.version = 11 : i64} {
  func.func @fused_kernel(%arg0: memref<64x8xi32, #tpu.memory_space<vmem>>, %arg1: memref<16x128xf32, #tpu.memory_space<vmem>>, %arg2: memref<1536x128xbf16, #tpu.memory_space<vmem>>, %arg3: memref<16x128xf32, #tpu.memory_space<vmem>>, %arg4: memref<16x128xf32, #tpu.memory_space<vmem>>) attributes {dimension_semantics = [], scalar_prefetch = 0 : i64, scratch_operands = 0 : i64, tpu.core_type = #tpu.core_type<tc>} {
    %c0 = arith.constant 0 : index
    %c0_0 = arith.constant 0 : index
    %0 = vector.load %arg3[%c0, %c0_0] : memref<16x128xf32, #tpu.memory_space<vmem>>, vector<16x128xf32>
    %c0_1 = arith.constant 0 : index
    %c0_2 = arith.constant 0 : index
    %1 = vector.load %arg1[%c0_1, %c0_2] : memref<16x128xf32, #tpu.memory_space<vmem>>, vector<16x128xf32>
    %2 = vector.extract_strided_slice %0 {offsets = [9, 0], sizes = [1, 128], strides = [1, 1]} : vector<16x128xf32> to vector<1x128xf32>
    %3 = vector.extract_strided_slice %0 {offsets = [10, 0], sizes = [1, 128], strides = [1, 1]} : vector<16x128xf32> to vector<1x128xf32>
    %cst = arith.constant dense<0.000000e+00> : vector<128xf32>
    %4 = vector.multi_reduction <add>, %1, %cst [0] : vector<16x128xf32> to vector<128xf32>
    %5 = vector.shape_cast %4 : vector<128xf32> to vector<1x128xf32>
    %cst_3 = arith.constant 1.600000e+01 : f32
    %6 = vector.broadcast %cst_3 : f32 to vector<1x128xf32>
    %7 = arith.divf %5, %6 : vector<1x128xf32>
    %8 = vector.broadcast %7 : vector<1x128xf32> to vector<16x128xf32>
    %9 = arith.subf %1, %8 : vector<16x128xf32>
    %10 = arith.mulf %9, %9 : vector<16x128xf32>
    %cst_4 = arith.constant dense<0.000000e+00> : vector<128xf32>
    %11 = vector.multi_reduction <add>, %10, %cst_4 [0] : vector<16x128xf32> to vector<128xf32>
    %12 = vector.shape_cast %11 : vector<128xf32> to vector<1x128xf32>
    %cst_5 = arith.constant 1.600000e+01 : f32
    %13 = vector.broadcast %cst_5 : f32 to vector<1x128xf32>
    %14 = arith.divf %12, %13 : vector<1x128xf32>
    %cst_6 = arith.constant 9.99999974E-6 : f32
    %15 = vector.broadcast %cst_6 : f32 to vector<1x128xf32>
    %16 = arith.addf %14, %15 : vector<1x128xf32>
    %17 = math.rsqrt %16 : vector<1x128xf32>
    %18 = arith.mulf %2, %17 : vector<1x128xf32>
    %19 = vector.broadcast %18 : vector<1x128xf32> to vector<16x128xf32>
    %20 = arith.mulf %9, %19 : vector<16x128xf32>
    %21 = vector.broadcast %3 : vector<1x128xf32> to vector<16x128xf32>
    %22 = arith.addf %20, %21 : vector<16x128xf32>
    %c0_7 = arith.constant 0 : index
    %c0_8 = arith.constant 0 : index
    %23 = vector.load %arg0[%c0_7, %c0_8] : memref<64x8xi32, #tpu.memory_space<vmem>>, vector<64x8xi32>
    %24 = vector.extract_strided_slice %23 {offsets = [0, 0], sizes = [64, 1], strides = [1, 1]} : vector<64x8xi32> to vector<64x1xi32>
    %25 = vector.extract_strided_slice %23 {offsets = [0, 1], sizes = [64, 1], strides = [1, 1]} : vector<64x8xi32> to vector<64x1xi32>
    %26 = tpu.iota {dimensions = array<i32: 1>} : vector<64x32xi32>
    %27 = vector.broadcast %24 : vector<64x1xi32> to vector<64x32xi32>
    %28 = arith.cmpi eq, %26, %27 : vector<64x32xi32>
    %c16_i32 = arith.constant 16 : i32
    %29 = vector.broadcast %c16_i32 : i32 to vector<64x1xi32>
    %30 = arith.addi %25, %29 : vector<64x1xi32>
    %31 = vector.broadcast %30 : vector<64x1xi32> to vector<64x32xi32>
    %32 = arith.cmpi eq, %26, %31 : vector<64x32xi32>
    %33 = arith.ori %28, %32 : vector<64x32xi1>
    %34 = arith.extui %33 : vector<64x32xi1> to vector<64x32xi32>
    %35 = arith.sitofp %34 : vector<64x32xi32> to vector<64x32xf32>
    %36 = arith.truncf %35 : vector<64x32xf32> to vector<64x32xbf16>
    %cst_9 = arith.constant 1.000000e+00 : bf16
    %37 = vector.broadcast %cst_9 : bf16 to vector<64x8xbf16>
    %cst_10 = arith.constant dense<0.000000e+00> : vector<32x8xf32>
    %38 = tpu.matmul %36, %37, %cst_10 {dimension_numbers = #tpu.dot_dimension_numbers<[0], [0], [1], [1], [0, 1, 1, 1], [], []>} : vector<64x32xbf16>, vector<64x8xbf16>, vector<32x8xf32> -> vector<32x8xf32>
    %39 = vector.extract_strided_slice %38 {offsets = [0, 0], sizes = [16, 1], strides = [1, 1]} : vector<32x8xf32> to vector<16x1xf32>
    %cst_11 = arith.constant 1.000000e+00 : f32
    %40 = vector.broadcast %cst_11 : f32 to vector<16x1xf32>
    %41 = arith.maximumf %39, %40 : vector<16x1xf32>
    %42 = tpu.reciprocal %41 {approx = true} : vector<16x1xf32> -> vector<16x1xf32>
    %c0_12 = arith.constant 0 : index
    %c0_13 = arith.constant 0 : index
    %43 = vector.load %arg2[%c0_12, %c0_13] : memref<1536x128xbf16, #tpu.memory_space<vmem>>, vector<128x128xbf16>
    %c128 = arith.constant 128 : index
    %c0_14 = arith.constant 0 : index
    %44 = vector.load %arg2[%c128, %c0_14] : memref<1536x128xbf16, #tpu.memory_space<vmem>>, vector<128x128xbf16>
    %c256 = arith.constant 256 : index
    %c0_15 = arith.constant 0 : index
    %45 = vector.load %arg2[%c256, %c0_15] : memref<1536x128xbf16, #tpu.memory_space<vmem>>, vector<128x128xbf16>
    %c384 = arith.constant 384 : index
    %c0_16 = arith.constant 0 : index
    %46 = vector.load %arg2[%c384, %c0_16] : memref<1536x128xbf16, #tpu.memory_space<vmem>>, vector<128x128xbf16>
    %47 = vector.extract_strided_slice %0 {offsets = [0, 0], sizes = [1, 128], strides = [1, 1]} : vector<16x128xf32> to vector<1x128xf32>
    %48 = vector.extract_strided_slice %0 {offsets = [1, 0], sizes = [1, 128], strides = [1, 1]} : vector<16x128xf32> to vector<1x128xf32>
    %49 = vector.extract_strided_slice %0 {offsets = [2, 0], sizes = [1, 128], strides = [1, 1]} : vector<16x128xf32> to vector<1x128xf32>
    %50 = arith.truncf %22 : vector<16x128xf32> to vector<16x128xbf16>
    %cst_17 = arith.constant dense<0.000000e+00> : vector<16x128xf32>
    %51 = tpu.matmul %50, %43, %cst_17 {dimension_numbers = #tpu.dot_dimension_numbers<[1], [0], [0], [1], [0, 0, 1, 1], [], []>} : vector<16x128xbf16>, vector<128x128xbf16>, vector<16x128xf32> -> vector<16x128xf32>
    %cst_18 = arith.constant dense<0.000000e+00> : vector<16x128xf32>
    %52 = tpu.matmul %50, %44, %cst_18 {dimension_numbers = #tpu.dot_dimension_numbers<[1], [0], [0], [1], [0, 0, 1, 1], [], []>} : vector<16x128xbf16>, vector<128x128xbf16>, vector<16x128xf32> -> vector<16x128xf32>
    %53 = tpu.concatenate %51, %52 in 0 : vector<16x128xf32>, vector<16x128xf32> -> vector<32x128xf32>
    %54 = arith.truncf %53 : vector<32x128xf32> to vector<32x128xbf16>
    %cst_19 = arith.constant dense<0.000000e+00> : vector<64x128xf32>
    %55 = tpu.matmul %36, %54, %cst_19 {dimension_numbers = #tpu.dot_dimension_numbers<[1], [0], [0], [1], [0, 0, 1, 1], [], []>} : vector<64x32xbf16>, vector<32x128xbf16>, vector<64x128xf32> -> vector<64x128xf32>
    %56 = vector.broadcast %47 : vector<1x128xf32> to vector<64x128xf32>
    %57 = arith.addf %55, %56 : vector<64x128xf32>
    %cst_20 = arith.constant 0.000000e+00 : f32
    %58 = vector.broadcast %cst_20 : f32 to vector<64x128xf32>
    %59 = arith.maximumf %57, %58 : vector<64x128xf32>
    %60 = arith.truncf %59 : vector<64x128xf32> to vector<64x128xbf16>
    %cst_21 = arith.constant dense<0.000000e+00> : vector<64x128xf32>
    %61 = tpu.matmul %60, %45, %cst_21 {dimension_numbers = #tpu.dot_dimension_numbers<[1], [0], [0], [1], [0, 0, 1, 1], [], []>} : vector<64x128xbf16>, vector<128x128xbf16>, vector<64x128xf32> -> vector<64x128xf32>
    %62 = vector.broadcast %48 : vector<1x128xf32> to vector<64x128xf32>
    %63 = arith.addf %61, %62 : vector<64x128xf32>
    %cst_22 = arith.constant 0.000000e+00 : f32
    %64 = vector.broadcast %cst_22 : f32 to vector<64x128xf32>
    %65 = arith.maximumf %63, %64 : vector<64x128xf32>
    %66 = arith.truncf %65 : vector<64x128xf32> to vector<64x128xbf16>
    %cst_23 = arith.constant dense<0.000000e+00> : vector<64x128xf32>
    %67 = tpu.matmul %66, %46, %cst_23 {dimension_numbers = #tpu.dot_dimension_numbers<[1], [0], [0], [1], [0, 0, 1, 1], [], []>} : vector<64x128xbf16>, vector<128x128xbf16>, vector<64x128xf32> -> vector<64x128xf32>
    %68 = vector.broadcast %49 : vector<1x128xf32> to vector<64x128xf32>
    %69 = arith.addf %67, %68 : vector<64x128xf32>
    %cst_24 = arith.constant 0.000000e+00 : f32
    %70 = vector.broadcast %cst_24 : f32 to vector<64x128xf32>
    %71 = arith.maximumf %69, %70 : vector<64x128xf32>
    %72 = arith.truncf %71 : vector<64x128xf32> to vector<64x128xbf16>
    %cst_25 = arith.constant dense<0.000000e+00> : vector<32x128xf32>
    %73 = tpu.matmul %36, %72, %cst_25 {dimension_numbers = #tpu.dot_dimension_numbers<[0], [0], [1], [1], [0, 1, 1, 1], [], []>} : vector<64x32xbf16>, vector<64x128xbf16>, vector<32x128xf32> -> vector<32x128xf32>
    %74 = vector.extract_strided_slice %73 {offsets = [0, 0], sizes = [16, 128], strides = [1, 1]} : vector<32x128xf32> to vector<16x128xf32>
    %75 = vector.broadcast %42 : vector<16x1xf32> to vector<16x128xf32>
    %76 = arith.mulf %74, %75 : vector<16x128xf32>
    %c512 = arith.constant 512 : index
    %c0_26 = arith.constant 0 : index
    %77 = vector.load %arg2[%c512, %c0_26] : memref<1536x128xbf16, #tpu.memory_space<vmem>>, vector<128x128xbf16>
    %c640 = arith.constant 640 : index
    %c0_27 = arith.constant 0 : index
    %78 = vector.load %arg2[%c640, %c0_27] : memref<1536x128xbf16, #tpu.memory_space<vmem>>, vector<128x128xbf16>
    %c768 = arith.constant 768 : index
    %c0_28 = arith.constant 0 : index
    %79 = vector.load %arg2[%c768, %c0_28] : memref<1536x128xbf16, #tpu.memory_space<vmem>>, vector<128x128xbf16>
    %c896 = arith.constant 896 : index
    %c0_29 = arith.constant 0 : index
    %80 = vector.load %arg2[%c896, %c0_29] : memref<1536x128xbf16, #tpu.memory_space<vmem>>, vector<128x128xbf16>
    %81 = vector.extract_strided_slice %0 {offsets = [3, 0], sizes = [1, 128], strides = [1, 1]} : vector<16x128xf32> to vector<1x128xf32>
    %82 = vector.extract_strided_slice %0 {offsets = [4, 0], sizes = [1, 128], strides = [1, 1]} : vector<16x128xf32> to vector<1x128xf32>
    %83 = vector.extract_strided_slice %0 {offsets = [5, 0], sizes = [1, 128], strides = [1, 1]} : vector<16x128xf32> to vector<1x128xf32>
    %84 = arith.truncf %76 : vector<16x128xf32> to vector<16x128xbf16>
    %cst_30 = arith.constant dense<0.000000e+00> : vector<16x128xf32>
    %85 = tpu.matmul %84, %77, %cst_30 {dimension_numbers = #tpu.dot_dimension_numbers<[1], [0], [0], [1], [0, 0, 1, 1], [], []>} : vector<16x128xbf16>, vector<128x128xbf16>, vector<16x128xf32> -> vector<16x128xf32>
    %cst_31 = arith.constant dense<0.000000e+00> : vector<16x128xf32>
    %86 = tpu.matmul %84, %78, %cst_31 {dimension_numbers = #tpu.dot_dimension_numbers<[1], [0], [0], [1], [0, 0, 1, 1], [], []>} : vector<16x128xbf16>, vector<128x128xbf16>, vector<16x128xf32> -> vector<16x128xf32>
    %87 = tpu.concatenate %85, %86 in 0 : vector<16x128xf32>, vector<16x128xf32> -> vector<32x128xf32>
    %88 = arith.truncf %87 : vector<32x128xf32> to vector<32x128xbf16>
    %cst_32 = arith.constant dense<0.000000e+00> : vector<64x128xf32>
    %89 = tpu.matmul %36, %88, %cst_32 {dimension_numbers = #tpu.dot_dimension_numbers<[1], [0], [0], [1], [0, 0, 1, 1], [], []>} : vector<64x32xbf16>, vector<32x128xbf16>, vector<64x128xf32> -> vector<64x128xf32>
    %90 = vector.broadcast %81 : vector<1x128xf32> to vector<64x128xf32>
    %91 = arith.addf %89, %90 : vector<64x128xf32>
    %cst_33 = arith.constant 0.000000e+00 : f32
    %92 = vector.broadcast %cst_33 : f32 to vector<64x128xf32>
    %93 = arith.maximumf %91, %92 : vector<64x128xf32>
    %94 = arith.truncf %93 : vector<64x128xf32> to vector<64x128xbf16>
    %cst_34 = arith.constant dense<0.000000e+00> : vector<64x128xf32>
    %95 = tpu.matmul %94, %79, %cst_34 {dimension_numbers = #tpu.dot_dimension_numbers<[1], [0], [0], [1], [0, 0, 1, 1], [], []>} : vector<64x128xbf16>, vector<128x128xbf16>, vector<64x128xf32> -> vector<64x128xf32>
    %96 = vector.broadcast %82 : vector<1x128xf32> to vector<64x128xf32>
    %97 = arith.addf %95, %96 : vector<64x128xf32>
    %cst_35 = arith.constant 0.000000e+00 : f32
    %98 = vector.broadcast %cst_35 : f32 to vector<64x128xf32>
    %99 = arith.maximumf %97, %98 : vector<64x128xf32>
    %100 = arith.truncf %99 : vector<64x128xf32> to vector<64x128xbf16>
    %cst_36 = arith.constant dense<0.000000e+00> : vector<64x128xf32>
    %101 = tpu.matmul %100, %80, %cst_36 {dimension_numbers = #tpu.dot_dimension_numbers<[1], [0], [0], [1], [0, 0, 1, 1], [], []>} : vector<64x128xbf16>, vector<128x128xbf16>, vector<64x128xf32> -> vector<64x128xf32>
    %102 = vector.broadcast %83 : vector<1x128xf32> to vector<64x128xf32>
    %103 = arith.addf %101, %102 : vector<64x128xf32>
    %cst_37 = arith.constant 0.000000e+00 : f32
    %104 = vector.broadcast %cst_37 : f32 to vector<64x128xf32>
    %105 = arith.maximumf %103, %104 : vector<64x128xf32>
    %106 = arith.truncf %105 : vector<64x128xf32> to vector<64x128xbf16>
    %cst_38 = arith.constant dense<0.000000e+00> : vector<32x128xf32>
    %107 = tpu.matmul %36, %106, %cst_38 {dimension_numbers = #tpu.dot_dimension_numbers<[0], [0], [1], [1], [0, 1, 1, 1], [], []>} : vector<64x32xbf16>, vector<64x128xbf16>, vector<32x128xf32> -> vector<32x128xf32>
    %108 = vector.extract_strided_slice %107 {offsets = [0, 0], sizes = [16, 128], strides = [1, 1]} : vector<32x128xf32> to vector<16x128xf32>
    %109 = vector.broadcast %42 : vector<16x1xf32> to vector<16x128xf32>
    %110 = arith.mulf %108, %109 : vector<16x128xf32>
    %c1024 = arith.constant 1024 : index
    %c0_39 = arith.constant 0 : index
    %111 = vector.load %arg2[%c1024, %c0_39] : memref<1536x128xbf16, #tpu.memory_space<vmem>>, vector<128x128xbf16>
    %c1152 = arith.constant 1152 : index
    %c0_40 = arith.constant 0 : index
    %112 = vector.load %arg2[%c1152, %c0_40] : memref<1536x128xbf16, #tpu.memory_space<vmem>>, vector<128x128xbf16>
    %c1280 = arith.constant 1280 : index
    %c0_41 = arith.constant 0 : index
    %113 = vector.load %arg2[%c1280, %c0_41] : memref<1536x128xbf16, #tpu.memory_space<vmem>>, vector<128x128xbf16>
    %c1408 = arith.constant 1408 : index
    %c0_42 = arith.constant 0 : index
    %114 = vector.load %arg2[%c1408, %c0_42] : memref<1536x128xbf16, #tpu.memory_space<vmem>>, vector<128x128xbf16>
    %115 = vector.extract_strided_slice %0 {offsets = [6, 0], sizes = [1, 128], strides = [1, 1]} : vector<16x128xf32> to vector<1x128xf32>
    %116 = vector.extract_strided_slice %0 {offsets = [7, 0], sizes = [1, 128], strides = [1, 1]} : vector<16x128xf32> to vector<1x128xf32>
    %117 = vector.extract_strided_slice %0 {offsets = [8, 0], sizes = [1, 128], strides = [1, 1]} : vector<16x128xf32> to vector<1x128xf32>
    %118 = arith.truncf %110 : vector<16x128xf32> to vector<16x128xbf16>
    %cst_43 = arith.constant dense<0.000000e+00> : vector<16x128xf32>
    %119 = tpu.matmul %118, %111, %cst_43 {dimension_numbers = #tpu.dot_dimension_numbers<[1], [0], [0], [1], [0, 0, 1, 1], [], []>} : vector<16x128xbf16>, vector<128x128xbf16>, vector<16x128xf32> -> vector<16x128xf32>
    %cst_44 = arith.constant dense<0.000000e+00> : vector<16x128xf32>
    %120 = tpu.matmul %118, %112, %cst_44 {dimension_numbers = #tpu.dot_dimension_numbers<[1], [0], [0], [1], [0, 0, 1, 1], [], []>} : vector<16x128xbf16>, vector<128x128xbf16>, vector<16x128xf32> -> vector<16x128xf32>
    %121 = tpu.concatenate %119, %120 in 0 : vector<16x128xf32>, vector<16x128xf32> -> vector<32x128xf32>
    %122 = arith.truncf %121 : vector<32x128xf32> to vector<32x128xbf16>
    %cst_45 = arith.constant dense<0.000000e+00> : vector<64x128xf32>
    %123 = tpu.matmul %36, %122, %cst_45 {dimension_numbers = #tpu.dot_dimension_numbers<[1], [0], [0], [1], [0, 0, 1, 1], [], []>} : vector<64x32xbf16>, vector<32x128xbf16>, vector<64x128xf32> -> vector<64x128xf32>
    %124 = vector.broadcast %115 : vector<1x128xf32> to vector<64x128xf32>
    %125 = arith.addf %123, %124 : vector<64x128xf32>
    %cst_46 = arith.constant 0.000000e+00 : f32
    %126 = vector.broadcast %cst_46 : f32 to vector<64x128xf32>
    %127 = arith.maximumf %125, %126 : vector<64x128xf32>
    %128 = arith.truncf %127 : vector<64x128xf32> to vector<64x128xbf16>
    %cst_47 = arith.constant dense<0.000000e+00> : vector<64x128xf32>
    %129 = tpu.matmul %128, %113, %cst_47 {dimension_numbers = #tpu.dot_dimension_numbers<[1], [0], [0], [1], [0, 0, 1, 1], [], []>} : vector<64x128xbf16>, vector<128x128xbf16>, vector<64x128xf32> -> vector<64x128xf32>
    %130 = vector.broadcast %116 : vector<1x128xf32> to vector<64x128xf32>
    %131 = arith.addf %129, %130 : vector<64x128xf32>
    %cst_48 = arith.constant 0.000000e+00 : f32
    %132 = vector.broadcast %cst_48 : f32 to vector<64x128xf32>
    %133 = arith.maximumf %131, %132 : vector<64x128xf32>
    %134 = arith.truncf %133 : vector<64x128xf32> to vector<64x128xbf16>
    %cst_49 = arith.constant dense<0.000000e+00> : vector<64x128xf32>
    %135 = tpu.matmul %134, %114, %cst_49 {dimension_numbers = #tpu.dot_dimension_numbers<[1], [0], [0], [1], [0, 0, 1, 1], [], []>} : vector<64x128xbf16>, vector<128x128xbf16>, vector<64x128xf32> -> vector<64x128xf32>
    %136 = vector.broadcast %117 : vector<1x128xf32> to vector<64x128xf32>
    %137 = arith.addf %135, %136 : vector<64x128xf32>
    %138 = arith.truncf %137 : vector<64x128xf32> to vector<64x128xbf16>
    %cst_50 = arith.constant dense<0.000000e+00> : vector<32x128xf32>
    %139 = tpu.matmul %36, %138, %cst_50 {dimension_numbers = #tpu.dot_dimension_numbers<[0], [0], [1], [1], [0, 1, 1, 1], [], []>} : vector<64x32xbf16>, vector<64x128xbf16>, vector<32x128xf32> -> vector<32x128xf32>
    %140 = vector.extract_strided_slice %139 {offsets = [0, 0], sizes = [16, 128], strides = [1, 1]} : vector<32x128xf32> to vector<16x128xf32>
    %141 = vector.broadcast %42 : vector<16x1xf32> to vector<16x128xf32>
    %142 = arith.mulf %140, %141 : vector<16x128xf32>
    %c0_51 = arith.constant 0 : index
    %c0_52 = arith.constant 0 : index
    %143 = vector.load %arg4[%c0_51, %c0_52] : memref<16x128xf32, #tpu.memory_space<vmem>>, vector<16x128xf32>
    tpu.vector_store %arg4[%c0_51, %c0_52], %142 {strides = array<i32>} : memref<16x128xf32, #tpu.memory_space<vmem>>, vector<16x128xf32>,
    return
  }
}

</mosaic_0001>

<llo_original>
// kernel: tpu_custom_call.1
$region0: #{tpu_custom_call.1}
  #allocation0 [shape = 'u32[]', space=smem, size = 0x4, offset = 0x4, fixed_abs, tag = 'smem constant byte address 0x4 - core index']
  #allocation1 [shape = 'u32[144,128]{1,0:T(1,128)}', space=vmem, size = 0x12000, scoped, tag = 'internal scratch']
  %s0 = inlined_call_operand.vmem [shape: s32[64,8], index: 0, kind: input, shape index: {}]
  %s1 = inlined_call_operand.vmem [shape: f32[16,128], index: 1, kind: input, shape index: {}]
  %s2 = inlined_call_operand.hbm [shape: bf16[1536,128], index: 2, kind: input, shape index: {}]
  %s3 = inlined_call_operand.vmem [shape: f32[16,128], index: 3, kind: input, shape index: {}]
  %s4 = inlined_call_operand.hbm [shape: f32[16,128], index: 4, kind: output, shape index: {}]
  %s5 = sld [smem:[#allocation0]]
  $region30: #{tpu_custom_call.1} parent=0
    _
  %s7 = ssub.s32 1, %s5
  %s8 = scalar_select 0, %s7, %s5
  $region1: #{tpu_custom_call.1} parent=0
    #allocation2 [shape = 'u8[393216]{0}', space=vmem, size = 0x60000, scoped, tag = 'input window, operand 2, single buffered']
    #allocation3 [shape = 's32[1]{0}', space=sflag, size = 0x4, scoped, tag = 'scoped memory for tpu_custom_call.1']
    #allocation4 [shape = 's32[1]{0}', space=sflag, size = 0x4, scoped, tag = 'scoped memory for tpu_custom_call.1']
    #allocation5 [shape = 'u8[8192]{0}', space=vmem, size = 0x2000, scoped, tag = 'output window, operand 0, single buffered']
    %9 = vsyncpa [#allocation3], 0
    %10 = vsyncpa [#allocation4], 0
    // Predicated region
    $region2: #{tpu_custom_call.1} parent=1 // pred_check
      _
    $region3: #{tpu_custom_call.1} parent=1 // pred_check_branch
      %12 = sbr.rel (0) target = $region5
    $region4: #{tpu_custom_call.1} parent=1 // pred_region
      _
    $region5: #{tpu_custom_call.1} parent=1 // pred_fallthru
      _
    // Predicated region
    $region6: #{tpu_custom_call.1} parent=1 // pred_check
      _
    $region7: #{tpu_custom_call.1} parent=1 // pred_check_branch
      %14 = sbr.rel (0) target = $region9
    $region8: #{tpu_custom_call.1} parent=1 // pred_region
      _
    $region9: #{tpu_custom_call.1} parent=1 // pred_fallthru
      _
    // Predicated region
    $region10: #{tpu_custom_call.1} parent=1 // pred_check
      _
    $region11: #{tpu_custom_call.1} parent=1 // pred_check_branch
      %16 = sbr.rel (0) target = $region13
    $region12: #{tpu_custom_call.1} parent=1 // pred_region
      %s18 = ssub.s32 12288, 12288
      %19 = vsyncadd [#allocation3], %s18
      %s20 = sshll.u32 [#allocation2], 4
      %s21 = int_to_ptr.vmem [resolvable:$true] %s20
      %26 = dma.hbm_to_vmem [thread:$0]  %s2, 12288, %s21, [#allocation3], 64, 64, 4
    $region13: #{tpu_custom_call.1} parent=1 // pred_fallthru
      _
    // Predicated region
    $region14: #{tpu_custom_call.1} parent=1 // pred_check
      _
    $region15: #{tpu_custom_call.1} parent=1 // pred_check_branch
      %28 = sbr.rel (0) target = $region17
    $region16: #{tpu_custom_call.1} parent=1 // pred_region
      _
    $region17: #{tpu_custom_call.1} parent=1 // pred_fallthru
      _
    // Predicated region
    $region18: #{tpu_custom_call.1} parent=1 // pred_check
      _
    $region19: #{tpu_custom_call.1} parent=1 // pred_check_branch
      %30 = sbr.rel (0) target = $region21
    $region20: #{tpu_custom_call.1} parent=1 // pred_region
      %31 = dma.done [#allocation3], 12288
    $region21: #{tpu_custom_call.1} parent=1 // pred_fallthru
      _
    %v34 = vld [vmem:[%s3] sm:$0xff]
    %v35 = vld [vmem:[%s3 + $0x8] sm:$0xff]
    %v36 = vld [vmem:[%s1] sm:$0xff]
    %v37 = vld [vmem:[%s1 + $0x8] sm:$0xff]
    %v38 = vadd.f32 %v36, %v37
    %v39 = vrot.slane %v38, 4
    %v40 = vadd.f32 %v38, %v39
    %v41 = vrot.slane %v40, 2
    %v42 = vadd.f32 %v40, %v41
    %v43 = vrot.slane %v42, 1
    %v44 = vadd.f32 %v42, %v43
    %v45 = vrcp.pop 16.0
    %v46 = vmul.f32 %v44, %v45
    %v47 = vsub.f32 %v36, %v46
    %v48 = vsub.f32 %v37, %v46
    %v49 = vmul.f32 %v47, %v47
    %v50 = vmul.f32 %v48, %v48
    %v51 = vadd.f32 %v49, %v50
    %v52 = vrot.slane %v51, 4
    %v53 = vadd.f32 %v51, %v52
    %v54 = vrot.slane %v53, 2
    %v55 = vadd.f32 %v53, %v54
    %v56 = vrot.slane %v55, 1
    %v57 = vadd.f32 %v55, %v56
    %v58 = vmul.f32 %v57, %v45
    %v59 = vadd.f32 %v58, 1e-05
    %v60 = vrsqrt.pop %v59
    %v61 = vmul.f32 %v35, %v60
    %v62 = vlaneseq
    %v63 = vshrl.u32 %v62, 7
    %v64 = vsub.s32 1, %v63
    %v65 = vrot.slane %v61, %v64
    %v66 = vmul.f32 %v47, %v65
    %v67 = vmul.f32 %v48, %v65
    %v68 = vlaneseq
    %v69 = vshrl.u32 %v68, 7
    %v70 = vsub.s32 2, %v69
    %v71 = vrot.slane %v35, %v70
    %v72 = vadd.f32 %v66, %v71
    %v73 = vadd.f32 %v67, %v71
    %v74 = vld [vmem:[%s0] sm:$0xff]
    %v75 = vld [vmem:[%s0 + $0x8] sm:$0xff]
    %v76 = vld [vmem:[%s0 + $0x10] sm:$0xff]
    %v77 = vld [vmem:[%s0 + $0x18] sm:$0xff]
    %v78 = vld [vmem:[%s0 + $0x20] sm:$0xff]
    %v79 = vld [vmem:[%s0 + $0x28] sm:$0xff]
    %v80 = vld [vmem:[%s0 + $0x30] sm:$0xff]
    %v81 = vld [vmem:[%s0 + $0x38] sm:$0xff]
    %v82 = vlaneseq
    %v83 = vand.u32 %v82, 127
    %84 = vset.pattern.permute.xlu0 0
    %85 = vperm.xlu0 %84, %v74
    %v86 = vpop.permute.xlu0 %85
    %87 = vset.pattern.permute.xlu0 0
    %88 = vperm.xlu0 %87, %v75
    %v89 = vpop.permute.xlu0 %88
    %90 = vset.pattern.permute.xlu0 0
    %91 = vperm.xlu0 %90, %v76
    %v92 = vpop.permute.xlu0 %91
    %93 = vset.pattern.permute.xlu0 0
    %94 = vperm.xlu0 %93, %v77
    %v95 = vpop.permute.xlu0 %94
    %96 = vset.pattern.permute.xlu0 0
    %97 = vperm.xlu0 %96, %v78
    %v98 = vpop.permute.xlu0 %97
    %99 = vset.pattern.permute.xlu0 0
    %100 = vperm.xlu0 %99, %v79
    %v101 = vpop.permute.xlu0 %100
    %102 = vset.pattern.permute.xlu0 0
    %103 = vperm.xlu0 %102, %v80
    %v104 = vpop.permute.xlu0 %103
    %105 = vset.pattern.permute.xlu0 0
    %106 = vperm.xlu0 %105, %v81
    %v107 = vpop.permute.xlu0 %106
    %vm108 = vcmp.eq.s32.totalorder %v83, %v86
    %vm109 = vcmp.eq.s32.totalorder %v83, %v89
    %vm110 = vcmp.eq.s32.totalorder %v83, %v92
    %vm111 = vcmp.eq.s32.totalorder %v83, %v95
    %vm112 = vcmp.eq.s32.totalorder %v83, %v98
    %vm113 = vcmp.eq.s32.totalorder %v83, %v101
    %vm114 = vcmp.eq.s32.totalorder %v83, %v104
    %vm115 = vcmp.eq.s32.totalorder %v83, %v107
    %v116 = vadd.s32 %v74, 16
    %v117 = vadd.s32 %v75, 16
    %v118 = vadd.s32 %v76, 16
    %v119 = vadd.s32 %v77, 16
    %v120 = vadd.s32 %v78, 16
    %v121 = vadd.s32 %v79, 16
    %v122 = vadd.s32 %v80, 16
    %v123 = vadd.s32 %v81, 16
    %124 = vset.pattern.permute.xlu0 1
    %125 = vperm.xlu0 %124, %v116
    %v126 = vpop.permute.xlu0 %125
    %127 = vset.pattern.permute.xlu0 1
    %128 = vperm.xlu0 %127, %v117
    %v129 = vpop.permute.xlu0 %128
    %130 = vset.pattern.permute.xlu0 1
    %131 = vperm.xlu0 %130, %v118
    %v132 = vpop.permute.xlu0 %131
    %133 = vset.pattern.permute.xlu0 1
    %134 = vperm.xlu0 %133, %v119
    %v135 = vpop.permute.xlu0 %134
    %136 = vset.pattern.permute.xlu0 1
    %137 = vperm.xlu0 %136, %v120
    %v138 = vpop.permute.xlu0 %137
    %139 = vset.pattern.permute.xlu0 1
    %140 = vperm.xlu0 %139, %v121
    %v141 = vpop.permute.xlu0 %140
    %142 = vset.pattern.permute.xlu0 1
    %143 = vperm.xlu0 %142, %v122
    %v144 = vpop.permute.xlu0 %143
    %145 = vset.pattern.permute.xlu0 1
    %146 = vperm.xlu0 %145, %v123
    %v147 = vpop.permute.xlu0 %146
    %vm148 = vcmp.eq.s32.totalorder %v83, %v126
    %vm149 = vcmp.eq.s32.totalorder %v83, %v129
    %vm150 = vcmp.eq.s32.totalorder %v83, %v132
    %vm151 = vcmp.eq.s32.totalorder %v83, %v135
    %vm152 = vcmp.eq.s32.totalorder %v83, %v138
    %vm153 = vcmp.eq.s32.totalorder %v83, %v141
    %vm154 = vcmp.eq.s32.totalorder %v83, %v144
    %vm155 = vcmp.eq.s32.totalorder %v83, %v147
    %vm156 = vmor %vm108, %vm148
    %vm157 = vmor %vm109, %vm149
    %vm158 = vmor %vm110, %vm150
    %vm159 = vmor %vm111, %vm151
    %vm160 = vmor %vm112, %vm152
    %vm161 = vmor %vm113, %vm153
    %vm162 = vmor %vm114, %vm154
    %vm163 = vmor %vm115, %vm155
    %v164 = vsel %vm156, 1, 0
    %v165 = vsel %vm157, 1, 0
    %v166 = vsel %vm158, 1, 0
    %v167 = vsel %vm159, 1, 0
    %v168 = vsel %vm160, 1, 0
    %v169 = vsel %vm161, 1, 0
    %v170 = vsel %vm162, 1, 0
    %v171 = vsel %vm163, 1, 0
    %v172 = vcvt.s32.f32 %v164
    %v173 = vcvt.s32.f32 %v165
    %v174 = vcvt.s32.f32 %v166
    %v175 = vcvt.s32.f32 %v167
    %v176 = vcvt.s32.f32 %v168
    %v177 = vcvt.s32.f32 %v169
    %v178 = vcvt.s32.f32 %v170
    %v179 = vcvt.s32.f32 %v171
    %v180 = vpack.c.bf16 %v173, %v172
    %v181 = vpack.c.bf16 %v175, %v174
    %v182 = vpack.c.bf16 %v177, %v176
    %v183 = vpack.c.bf16 %v179, %v178
    %184 = vxpose.xlu0.c.b16.start [1/8] %v180, 128
    %185 = vxpose.xlu0.c.b16.cont [2/8] %v181, 128
    %186 = vxpose.xlu0.c.b16.cont [3/8] %v182, 128
    %187 = vxpose.xlu0.c.b16.cont [4/8] %v183, 128
    %188 = vxpose.xlu0.c.b16.cont [5/8] 0, 128
    %189 = vxpose.xlu0.c.b16.cont [6/8] 0, 128
    %190 = vxpose.xlu0.c.b16.cont [7/8] 0, 128
    %191 = vxpose.xlu0.c.b16.end [8/8] 0, 128
    %v192 = vpop.trf.xlu0
    %v193 = vpop.trf.xlu0
    %v194 = vpop.trf.xlu0
    %v195 = vpop.trf.xlu0
    %v196 = vpop.trf.xlu0
    %v197 = vpop.trf.xlu0
    %v198 = vpop.trf.xlu0
    %v199 = vpop.trf.xlu0
    %vm200 = vcmask 523264
    %v202 = vsel %vm200, %v192, 0
    %v205 = vsel %vm200, %v193, 0
    %207 = vmatprep.subr.bf16.mxu0 0
    %208 = vmatpush1.bf16.msra.mxu0 1065369472
    %209 = vmatprep.subr.bf16.mxu0 0
    %210 = vmatpush1.bf16.msra.mxu0 1065369472
    %211 = vmatprep.subr.bf16.mxu0 0
    %212 = vmatpush1.bf16.msra.mxu0 1065369472
    %213 = vmatprep.subr.bf16.mxu0 0
    %214 = vmatpush1.bf16.msra.mxu0 1065369472
    %215 = vmatprep.subr.bf16.mxu0 0
    %216 = vmatpush1.bf16.msra.mxu0 0
    %217 = vmatprep.subr.bf16.mxu0 0
    %218 = vmatpush1.bf16.msra.mxu0 0
    %219 = vmatprep.subr.bf16.mxu0 0
    %220 = vmatpush1.bf16.msra.mxu0 0
    %221 = vmatprep.subr.bf16.mxu0 0
    %222 = vmatpush1.bf16.msra.mxu0 0
    %223 = vmatprep.subr.bf16.mxu0 0
    %224 = vmatpush1.bf16.msra.mxu0 0
    %225 = vmatprep.subr.bf16.mxu0 0
    %226 = vmatpush1.bf16.msra.mxu0 0
    %227 = vmatprep.subr.bf16.mxu0 0
    %228 = vmatpush1.bf16.msra.mxu0 0
    %229 = vmatprep.subr.bf16.mxu0 0
    %230 = vmatpush1.bf16.msra.mxu0 0
    %231 = vmatprep.subr.bf16.mxu0 0
    %232 = vmatpush1.bf16.msra.mxu0 0
    %233 = vmatprep.subr.bf16.mxu0 0
    %234 = vmatpush1.bf16.msra.mxu0 0
    %235 = vmatprep.subr.bf16.mxu0 0
    %236 = vmatpush1.bf16.msra.mxu0 0
    %237 = vmatprep.subr.bf16.mxu0 0
    %238 = vmatpush1.bf16.msra.mxu0 0
    %239 = vmatprep.mubr.bf16.mxu0 0
    %240 = vmatmul.mubr.bf16.gmra.mrb[0].mxu0 %v202
    %v241 = vpop.f32.mrb[0].mxu0
    %v242 = vadd.f32 0.0, %v241
    %v243 = vpop.f32.mrb[0].mxu0
    %v244 = vpop.f32.mrb[0].mxu0
    %v245 = vadd.f32 0.0, %v244
    %v246 = vpop.f32.mrb[0].mxu0
    %247 = vmatprep.mubr.bf16.mxu0 0
    %248 = vmatmul.mubr.bf16.gmra.mrb[0].mxu0 %v205
    %v249 = vpop.f32.mrb[0].mxu0
    %v250 = vpop.f32.mrb[0].mxu0
    %v251 = vpop.f32.mrb[0].mxu0
    %v252 = vpop.f32.mrb[0].mxu0
    %253 = vdwg.mxu0
    %v254 = vmax.f32 %v242, 1.0
    %v255 = vmax.f32 %v245, 1.0
    %v256 = vrcp.pop %v254
    %v257 = vrcp.pop %v255
    %v258 = vld [vmem:[#allocation2] sm:$0xf]
    %v259 = vld [vmem:[#allocation2 + $0x4] sm:$0xf]
    %v260 = vld [vmem:[#allocation2 + $0x8] sm:$0xf]
    %v261 = vld [vmem:[#allocation2 + $0xc] sm:$0xf]
    %v262 = vld [vmem:[#allocation2 + $0x10] sm:$0xf]
    %v263 = vld [vmem:[#allocation2 + $0x14] sm:$0xf]
    %v264 = vld [vmem:[#allocation2 + $0x18] sm:$0xf]
    %v265 = vld [vmem:[#allocation2 + $0x1c] sm:$0xf]
    %v266 = vld [vmem:[#allocation2 + $0x20] sm:$0xf]
    %v267 = vld [vmem:[#allocation2 + $0x24] sm:$0xf]
    %v268 = vld [vmem:[#allocation2 + $0x28] sm:$0xf]
    %v269 = vld [vmem:[#allocation2 + $0x2c] sm:$0xf]
    %v270 = vld [vmem:[#allocation2 + $0x30] sm:$0xf]
    %v271 = vld [vmem:[#allocation2 + $0x34] sm:$0xf]
    %v272 = vld [vmem:[#allocation2 + $0x38] sm:$0xf]
    %v273 = vld [vmem:[#allocation2 + $0x3c] sm:$0xf]
    %v274 = vld [vmem:[#allocation2 + $0x40] sm:$0xf]
    %v275 = vld [vmem:[#allocation2 + $0x44] sm:$0xf]
    %v276 = vld [vmem:[#allocation2 + $0x48] sm:$0xf]
    %v277 = vld [vmem:[#allocation2 + $0x4c] sm:$0xf]
    %v278 = vld [vmem:[#allocation2 + $0x50] sm:$0xf]
    %v279 = vld [vmem:[#allocation2 + $0x54] sm:$0xf]
    %v280 = vld [vmem:[#allocation2 + $0x58] sm:$0xf]
    %v281 = vld [vmem:[#allocation2 + $0x5c] sm:$0xf]
    %v282 = vld [vmem:[#allocation2 + $0x60] sm:$0xf]
    %v283 = vld [vmem:[#allocation2 + $0x64] sm:$0xf]
    %v284 = vld [vmem:[#allocation2 + $0x68] sm:$0xf]
    %v285 = vld [vmem:[#allocation2 + $0x6c] sm:$0xf]
    %v286 = vld [vmem:[#allocation2 + $0x70] sm:$0xf]
    %v287 = vld [vmem:[#allocation2 + $0x74] sm:$0xf]
    %v288 = vld [vmem:[#allocation2 + $0x78] sm:$0xf]
    %v289 = vld [vmem:[#allocation2 + $0x7c] sm:$0xf]
    %v290 = vld [vmem:[#allocation2 + $0x80] sm:$0xf]
    %v291 = vld [vmem:[#allocation2 + $0x84] sm:$0xf]
    %v292 = vld [vmem:[#allocation2 + $0x88] sm:$0xf]
    %v293 = vld [vmem:[#allocation2 + $0x8c] sm:$0xf]
    %v294 = vld [vmem:[#allocation2 + $0x90] sm:$0xf]
    %v295 = vld [vmem:[#allocation2 + $0x94] sm:$0xf]
    %v296 = vld [vmem:[#allocation2 + $0x98] sm:$0xf]
    %v297 = vld [vmem:[#allocation2 + $0x9c] sm:$0xf]
    %v298 = vld [vmem:[#allocation2 + $0xa0] sm:$0xf]
    %v299 = vld [vmem:[#allocation2 + $0xa4] sm:$0xf]
    %v300 = vld [vmem:[#allocation2 + $0xa8] sm:$0xf]
    %v301 = vld [vmem:[#allocation2 + $0xac] sm:$0xf]
    %v302 = vld [vmem:[#allocation2 + $0xb0] sm:$0xf]
    %v303 = vld [vmem:[#allocation2 + $0xb4] sm:$0xf]
    %v304 = vld [vmem:[#allocation2 + $0xb8] sm:$0xf]
    %v305 = vld [vmem:[#allocation2 + $0xbc] sm:$0xf]
    %v306 = vld [vmem:[#allocation2 + $0xc0] sm:$0xf]
    %v307 = vld [vmem:[#allocation2 + $0xc4] sm:$0xf]
    %v308 = vld [vmem:[#allocation2 + $0xc8] sm:$0xf]
    %v309 = vld [vmem:[#allocation2 + $0xcc] sm:$0xf]
    %v310 = vld [vmem:[#allocation2 + $0xd0] sm:$0xf]
    %v311 = vld [vmem:[#allocation2 + $0xd4] sm:$0xf]
    %v312 = vld [vmem:[#allocation2 + $0xd8] sm:$0xf]
    %v313 = vld [vmem:[#allocation2 + $0xdc] sm:$0xf]
    %v314 = vld [vmem:[#allocation2 + $0xe0] sm:$0xf]
    %v315 = vld [vmem:[#allocation2 + $0xe4] sm:$0xf]
    %v316 = vld [vmem:[#allocation2 + $0xe8] sm:$0xf]
    %v317 = vld [vmem:[#allocation2 + $0xec] sm:$0xf]
    %v318 = vld [vmem:[#allocation2 + $0xf0] sm:$0xf]
    %v319 = vld [vmem:[#allocation2 + $0xf4] sm:$0xf]
    %v320 = vld [vmem:[#allocation2 + $0xf8] sm:$0xf]
    %v321 = vld [vmem:[#allocation2 + $0xfc] sm:$0xf]
    %v322 = vpack.c.bf16 %v73, %v72
    %v339 = vunpack.c.l.b16 %v258
    %v340 = vunpack.c.l.b16 %v259
    %v341 = vunpack.c.l.b16 %v260
    %v342 = vunpack.c.l.b16 %v261
    %v343 = vunpack.c.l.b16 %v262
    %v344 = vunpack.c.l.b16 %v263
    %v345 = vunpack.c.l.b16 %v264
    %v346 = vunpack.c.l.b16 %v265
    %v347 = vunpack.c.l.b16 %v266
    %v348 = vunpack.c.l.b16 %v267
    %v349 = vunpack.c.l.b16 %v268
    %v350 = vunpack.c.l.b16 %v269
    %v351 = vunpack.c.l.b16 %v270
    %v352 = vunpack.c.l.b16 %v271
    %v353 = vunpack.c.l.b16 %v272
    %v354 = vunpack.c.l.b16 %v273
    %v355 = vpack.c.b16 %v340, %v339
    %v356 = vpack.c.b16 %v342, %v341
    %v357 = vpack.c.b16 %v344, %v343
    %v358 = vpack.c.b16 %v346, %v345
    %v359 = vpack.c.b16 %v348, %v347
    %v360 = vpack.c.b16 %v350, %v349
    %v361 = vpack.c.b16 %v352, %v351
    %v362 = vpack.c.b16 %v354, %v353
    %371 = vmatprep.subr.bf16.mxu0 0
    %372 = vmatpush1.bf16.msra.mxu0 %v355
    %373 = vmatprep.subr.bf16.mxu0 0
    %374 = vmatpush1.bf16.msra.mxu0 %v356
    %375 = vmatprep.subr.bf16.mxu0 0
    %376 = vmatpush1.bf16.msra.mxu0 %v357
    %377 = vmatprep.subr.bf16.mxu0 0
    %378 = vmatpush1.bf16.msra.mxu0 %v358
    %379 = vmatprep.subr.bf16.mxu0 0
    %380 = vmatpush1.bf16.msra.mxu0 %v359
    %381 = vmatprep.subr.bf16.mxu0 0
    %382 = vmatpush1.bf16.msra.mxu0 %v360
    %383 = vmatprep.subr.bf16.mxu0 0
    %384 = vmatpush1.bf16.msra.mxu0 %v361
    %385 = vmatprep.subr.bf16.mxu0 0
    %386 = vmatpush1.bf16.msra.mxu0 %v362
    %387 = vmatprep.subr.bf16.mxu0 0
    %388 = vmatpush1.bf16.msra.mxu0 0
    %389 = vmatprep.subr.bf16.mxu0 0
    %390 = vmatpush1.bf16.msra.mxu0 0
    %391 = vmatprep.subr.bf16.mxu0 0
    %392 = vmatpush1.bf16.msra.mxu0 0
    %393 = vmatprep.subr.bf16.mxu0 0
    %394 = vmatpush1.bf16.msra.mxu0 0
    %395 = vmatprep.subr.bf16.mxu0 0
    %396 = vmatpush1.bf16.msra.mxu0 0
    %397 = vmatprep.subr.bf16.mxu0 0
    %398 = vmatpush1.bf16.msra.mxu0 0
    %399 = vmatprep.subr.bf16.mxu0 0
    %400 = vmatpush1.bf16.msra.mxu0 0
    %401 = vmatprep.subr.bf16.mxu0 0
    %402 = vmatpush1.bf16.msra.mxu0 0
    %403 = vmatprep.mubr.bf16.mxu0 0
    %404 = vmatmul.mubr.bf16.gmra.mrb[0].mxu0 %v322
    %v405 = vpop.f32.mrb[0].mxu0
    %v406 = vadd.f32 0.0, %v405
    %v407 = vpop.f32.mrb[0].mxu0
    %v408 = vpop.f32.mrb[0].mxu0
    %v409 = vadd.f32 0.0, %v408
    %v410 = vpop.f32.mrb[0].mxu0
    %411 = vdwg.mxu0
    %v428 = vunpack.c.l.b16 %v274
    %v429 = vunpack.c.l.b16 %v275
    %v430 = vunpack.c.l.b16 %v276
    %v431 = vunpack.c.l.b16 %v277
    %v432 = vunpack.c.l.b16 %v278
    %v433 = vunpack.c.l.b16 %v279
    %v434 = vunpack.c.l.b16 %v280
    %v435 = vunpack.c.l.b16 %v281
    %v436 = vunpack.c.l.b16 %v282
    %v437 = vunpack.c.l.b16 %v283
    %v438 = vunpack.c.l.b16 %v284
    %v439 = vunpack.c.l.b16 %v285
    %v440 = vunpack.c.l.b16 %v286
    %v441 = vunpack.c.l.b16 %v287
    %v442 = vunpack.c.l.b16 %v288
    %v443 = vunpack.c.l.b16 %v289
    %v444 = vpack.c.b16 %v429, %v428
    %v445 = vpack.c.b16 %v431, %v430
    %v446 = vpack.c.b16 %v433, %v432
    %v447 = vpack.c.b16 %v435, %v434
    %v448 = vpack.c.b16 %v437, %v436
    %v449 = vpack.c.b16 %v439, %v438
    %v450 = vpack.c.b16 %v441, %v440
    %v451 = vpack.c.b16 %v443, %v442
    %460 = vmatprep.subr.bf16.mxu0 0
    %461 = vmatpush1.bf16.msra.mxu0 %v444
    %462 = vmatprep.subr.bf16.mxu0 0
    %463 = vmatpush1.bf16.msra.mxu0 %v445
    %464 = vmatprep.subr.bf16.mxu0 0
    %465 = vmatpush1.bf16.msra.mxu0 %v446
    %466 = vmatprep.subr.bf16.mxu0 0
    %467 = vmatpush1.bf16.msra.mxu0 %v447
    %468 = vmatprep.subr.bf16.mxu0 0
    %469 = vmatpush1.bf16.msra.mxu0 %v448
    %470 = vmatprep.subr.bf16.mxu0 0
    %471 = vmatpush1.bf16.msra.mxu0 %v449
    %472 = vmatprep.subr.bf16.mxu0 0
    %473 = vmatpush1.bf16.msra.mxu0 %v450
    %474 = vmatprep.subr.bf16.mxu0 0
    %475 = vmatpush1.bf16.msra.mxu0 %v451
    %476 = vmatprep.subr.bf16.mxu0 0
    %477 = vmatpush1.bf16.msra.mxu0 0
    %478 = vmatprep.subr.bf16.mxu0 0
    %479 = vmatpush1.bf16.msra.mxu0 0
    %480 = vmatprep.subr.bf16.mxu0 0
    %481 = vmatpush1.bf16.msra.mxu0 0
    %482 = vmatprep.subr.bf16.mxu0 0
    %483 = vmatpush1.bf16.msra.mxu0 0
    %484 = vmatprep.subr.bf16.mxu0 0
    %485 = vmatpush1.bf16.msra.mxu0 0
    %486 = vmatprep.subr.bf16.mxu0 0
    %487 = vmatpush1.bf16.msra.mxu0 0
    %488 = vmatprep.subr.bf16.mxu0 0
    %489 = vmatpush1.bf16.msra.mxu0 0
    %490 = vmatprep.subr.bf16.mxu0 0
    %491 = vmatpush1.bf16.msra.mxu0 0
    %492 = vmatprep.mubr.bf16.mxu0 0
    %493 = vmatmul.mubr.bf16.gmra.mrb[0].mxu0 %v322
    %v494 = vpop.f32.mrb[0].mxu0
    %v495 = vadd.f32 0.0, %v494
    %v496 = vpop.f32.mrb[0].mxu0
    %v497 = vpop.f32.mrb[0].mxu0
    %v498 = vadd.f32 0.0, %v497
    %v499 = vpop.f32.mrb[0].mxu0
    %500 = vdwg.mxu0
    %v501 = vpack.c.bf16 %v409, %v406
    %v502 = vpack.c.bf16 %v498, %v495
    %v503 = vlaneseq
    %v504 = vshrl.u32 %v503, 7
    %v505 = vsub.s32 0, %v504
    %v506 = vrot.slane %v34, %v505
    %vm507 = vcmask 261120
    %v509 = vsel %vm507, %v180, 0
    %v512 = vsel %vm507, %v181, 0
    %v515 = vsel %vm507, %v182, 0
    %v518 = vsel %vm507, %v183, 0
    %520 = vmatprep.subr.bf16.mxu0 0
    %521 = vmatpush1.bf16.msra.mxu0 %v501
    %522 = vmatprep.subr.bf16.mxu0 0
    %523 = vmatpush1.bf16.msra.mxu0 %v502
    %524 = vmatprep.subr.bf16.mxu0 0
    %525 = vmatpush1.bf16.msra.mxu0 0
    %526 = vmatprep.subr.bf16.mxu0 0
    %527 = vmatpush1.bf16.msra.mxu0 0
    %528 = vmatprep.subr.bf16.mxu0 0
    %529 = vmatpush1.bf16.msra.mxu0 0
    %530 = vmatprep.subr.bf16.mxu0 0
    %531 = vmatpush1.bf16.msra.mxu0 0
    %532 = vmatprep.subr.bf16.mxu0 0
    %533 = vmatpush1.bf16.msra.mxu0 0
    %534 = vmatprep.subr.bf16.mxu0 0
    %535 = vmatpush1.bf16.msra.mxu0 0
    %536 = vmatprep.subr.bf16.mxu0 0
    %537 = vmatpush1.bf16.msra.mxu0 0
    %538 = vmatprep.subr.bf16.mxu0 0
    %539 = vmatpush1.bf16.msra.mxu0 0
    %540 = vmatprep.subr.bf16.mxu0 0
    %541 = vmatpush1.bf16.msra.mxu0 0
    %542 = vmatprep.subr.bf16.mxu0 0
    %543 = vmatpush1.bf16.msra.mxu0 0
    %544 = vmatprep.subr.bf16.mxu0 0
    %545 = vmatpush1.bf16.msra.mxu0 0
    %546 = vmatprep.subr.bf16.mxu0 0
    %547 = vmatpush1.bf16.msra.mxu0 0
    %548 = vmatprep.subr.bf16.mxu0 0
    %549 = vmatpush1.bf16.msra.mxu0 0
    %550 = vmatprep.subr.bf16.mxu0 0
    %551 = vmatpush1.bf16.msra.mxu0 0
    %552 = vmatprep.mubr.bf16.mxu0 0
    %553 = vmatmul.mubr.bf16.gmra.mrb[0].mxu0 %v509
    %v554 = vpop.f32.mrb[0].mxu0
    %v555 = vadd.f32 %v506, %v554
    %v556 = vpop.f32.mrb[0].mxu0
    %v557 = vpop.f32.mrb[0].mxu0
    %v558 = vadd.f32 %v506, %v557
    %v559 = vpop.f32.mrb[0].mxu0
    %560 = vmatprep.mubr.bf16.mxu0 0
    %561 = vmatmul.mubr.bf16.gmra.mrb[0].mxu0 %v512
    %v562 = vpop.f32.mrb[0].mxu0
    %v563 = vadd.f32 %v506, %v562
    %v564 = vpop.f32.mrb[0].mxu0
    %v565 = vpop.f32.mrb[0].mxu0
    %v566 = vadd.f32 %v506, %v565
    %v567 = vpop.f32.mrb[0].mxu0
    %568 = vmatprep.mubr.bf16.mxu0 0
    %569 = vmatmul.mubr.bf16.gmra.mrb[0].mxu0 %v515
    %v570 = vpop.f32.mrb[0].mxu0
    %v571 = vadd.f32 %v506, %v570
    %v572 = vpop.f32.mrb[0].mxu0
    %v573 = vpop.f32.mrb[0].mxu0
    %v574 = vadd.f32 %v506, %v573
    %v575 = vpop.f32.mrb[0].mxu0
    %576 = vmatprep.mubr.bf16.mxu0 0
    %577 = vmatmul.mubr.bf16.gmra.mrb[0].mxu0 %v518
    %v578 = vpop.f32.mrb[0].mxu0
    %v579 = vadd.f32 %v506, %v578
    %v580 = vpop.f32.mrb[0].mxu0
    %v581 = vpop.f32.mrb[0].mxu0
    %v582 = vadd.f32 %v506, %v581
    %v583 = vpop.f32.mrb[0].mxu0
    %584 = vdwg.mxu0
    %v585 = vmax.f32 %v555, 0.0
    %v586 = vmax.f32 %v558, 0.0
    %v587 = vmax.f32 %v563, 0.0
    %v588 = vmax.f32 %v566, 0.0
    %v589 = vmax.f32 %v571, 0.0
    %v590 = vmax.f32 %v574, 0.0
    %v591 = vmax.f32 %v579, 0.0
    %v592 = vmax.f32 %v582, 0.0
    %v593 = vpack.c.bf16 %v586, %v585
    %v594 = vpack.c.bf16 %v588, %v587
    %v595 = vpack.c.bf16 %v590, %v589
    %v596 = vpack.c.bf16 %v592, %v591
    %v597 = vlaneseq
    %v598 = vshrl.u32 %v597, 7
    %v599 = vsub.s32 1, %v598
    %v600 = vrot.slane %v34, %v599
    %v617 = vunpack.c.l.b16 %v290
    %v618 = vunpack.c.l.b16 %v291
    %v619 = vunpack.c.l.b16 %v292
    %v620 = vunpack.c.l.b16 %v293
    %v621 = vunpack.c.l.b16 %v294
    %v622 = vunpack.c.l.b16 %v295
    %v623 = vunpack.c.l.b16 %v296
    %v624 = vunpack.c.l.b16 %v297
    %v625 = vunpack.c.l.b16 %v298
    %v626 = vunpack.c.l.b16 %v299
    %v627 = vunpack.c.l.b16 %v300
    %v628 = vunpack.c.l.b16 %v301
    %v629 = vunpack.c.l.b16 %v302
    %v630 = vunpack.c.l.b16 %v303
    %v631 = vunpack.c.l.b16 %v304
    %v632 = vunpack.c.l.b16 %v305
    %v633 = vpack.c.b16 %v618, %v617
    %v634 = vpack.c.b16 %v620, %v619
    %v635 = vpack.c.b16 %v622, %v621
    %v636 = vpack.c.b16 %v624, %v623
    %v637 = vpack.c.b16 %v626, %v625
    %v638 = vpack.c.b16 %v628, %v627
    %v639 = vpack.c.b16 %v630, %v629
    %v640 = vpack.c.b16 %v632, %v631
    %649 = vmatprep.subr.bf16.mxu0 0
    %650 = vmatpush1.bf16.msra.mxu0 %v633
    %651 = vmatprep.subr.bf16.mxu0 0
    %652 = vmatpush1.bf16.msra.mxu0 %v634
    %653 = vmatprep.subr.bf16.mxu0 0
    %654 = vmatpush1.bf16.msra.mxu0 %v635
    %655 = vmatprep.subr.bf16.mxu0 0
    %656 = vmatpush1.bf16.msra.mxu0 %v636
    %657 = vmatprep.subr.bf16.mxu0 0
    %658 = vmatpush1.bf16.msra.mxu0 %v637
    %659 = vmatprep.subr.bf16.mxu0 0
    %660 = vmatpush1.bf16.msra.mxu0 %v638
    %661 = vmatprep.subr.bf16.mxu0 0
    %662 = vmatpush1.bf16.msra.mxu0 %v639
    %663 = vmatprep.subr.bf16.mxu0 0
    %664 = vmatpush1.bf16.msra.mxu0 %v640
    %665 = vmatprep.subr.bf16.mxu0 0
    %666 = vmatpush1.bf16.msra.mxu0 0
    %667 = vmatprep.subr.bf16.mxu0 0
    %668 = vmatpush1.bf16.msra.mxu0 0
    %669 = vmatprep.subr.bf16.mxu0 0
    %670 = vmatpush1.bf16.msra.mxu0 0
    %671 = vmatprep.subr.bf16.mxu0 0
    %672 = vmatpush1.bf16.msra.mxu0 0
    %673 = vmatprep.subr.bf16.mxu0 0
    %674 = vmatpush1.bf16.msra.mxu0 0
    %675 = vmatprep.subr.bf16.mxu0 0
    %676 = vmatpush1.bf16.msra.mxu0 0
    %677 = vmatprep.subr.bf16.mxu0 0
    %678 = vmatpush1.bf16.msra.mxu0 0
    %679 = vmatprep.subr.bf16.mxu0 0
    %680 = vmatpush1.bf16.msra.mxu0 0
    %681 = vmatprep.mubr.bf16.mxu0 0
    %682 = vmatmul.mubr.bf16.gmra.mrb[0].mxu0 %v593
    %v683 = vpop.f32.mrb[0].mxu0
    %v684 = vadd.f32 %v600, %v683
    %v685 = vpop.f32.mrb[0].mxu0
    %v686 = vpop.f32.mrb[0].mxu0
    %v687 = vadd.f32 %v600, %v686
    %v688 = vpop.f32.mrb[0].mxu0
    %689 = vmatprep.mubr.bf16.mxu0 0
    %690 = vmatmul.mubr.bf16.gmra.mrb[0].mxu0 %v594
    %v691 = vpop.f32.mrb[0].mxu0
    %v692 = vadd.f32 %v600, %v691
    %v693 = vpop.f32.mrb[0].mxu0
    %v694 = vpop.f32.mrb[0].mxu0
    %v695 = vadd.f32 %v600, %v694
    %v696 = vpop.f32.mrb[0].mxu0
    %697 = vmatprep.mubr.bf16.mxu0 0
    %698 = vmatmul.mubr.bf16.gmra.mrb[0].mxu0 %v595
    %v699 = vpop.f32.mrb[0].mxu0
    %v700 = vadd.f32 %v600, %v699
    %v701 = vpop.f32.mrb[0].mxu0
    %v702 = vpop.f32.mrb[0].mxu0
    %v703 = vadd.f32 %v600, %v702
    %v704 = vpop.f32.mrb[0].mxu0
    %705 = vmatprep.mubr.bf16.mxu0 0
    %706 = vmatmul.mubr.bf16.gmra.mrb[0].mxu0 %v596
    %v707 = vpop.f32.mrb[0].mxu0
    %v708 = vadd.f32 %v600, %v707
    %v709 = vpop.f32.mrb[0].mxu0
    %v710 = vpop.f32.mrb[0].mxu0
    %v711 = vadd.f32 %v600, %v710
    %v712 = vpop.f32.mrb[0].mxu0
    %713 = vdwg.mxu0
    %v714 = vmax.f32 %v684, 0.0
    %v715 = vmax.f32 %v687, 0.0
    %v716 = vmax.f32 %v692, 0.0
    %v717 = vmax.f32 %v695, 0.0
    %v718 = vmax.f32 %v700, 0.0
    %v719 = vmax.f32 %v703, 0.0
    %v720 = vmax.f32 %v708, 0.0
    %v721 = vmax.f32 %v711, 0.0
    %v722 = vpack.c.bf16 %v715, %v714
    %v723 = vpack.c.bf16 %v717, %v716
    %v724 = vpack.c.bf16 %v719, %v718
    %v725 = vpack.c.bf16 %v721, %v720
    %v726 = vlaneseq
    %v727 = vshrl.u32 %v726, 7
    %v728 = vsub.s32 2, %v727
    %v729 = vrot.slane %v34, %v728
    %v746 = vunpack.c.l.b16 %v306
    %v747 = vunpack.c.l.b16 %v307
    %v748 = vunpack.c.l.b16 %v308
    %v749 = vunpack.c.l.b16 %v309
    %v750 = vunpack.c.l.b16 %v310
    %v751 = vunpack.c.l.b16 %v311
    %v752 = vunpack.c.l.b16 %v312
    %v753 = vunpack.c.l.b16 %v313
    %v754 = vunpack.c.l.b16 %v314
    %v755 = vunpack.c.l.b16 %v315
    %v756 = vunpack.c.l.b16 %v316
    %v757 = vunpack.c.l.b16 %v317
    %v758 = vunpack.c.l.b16 %v318
    %v759 = vunpack.c.l.b16 %v319
    %v760 = vunpack.c.l.b16 %v320
    %v761 = vunpack.c.l.b16 %v321
    %v762 = vpack.c.b16 %v747, %v746
    %v763 = vpack.c.b16 %v749, %v748
    %v764 = vpack.c.b16 %v751, %v750
    %v765 = vpack.c.b16 %v753, %v752
    %v766 = vpack.c.b16 %v755, %v754
    %v767 = vpack.c.b16 %v757, %v756
    %v768 = vpack.c.b16 %v759, %v758
    %v769 = vpack.c.b16 %v761, %v760
    %778 = vmatprep.subr.bf16.mxu0 0
    %779 = vmatpush1.bf16.msra.mxu0 %v762
    %780 = vmatprep.subr.bf16.mxu0 0
    %781 = vmatpush1.bf16.msra.mxu0 %v763
    %782 = vmatprep.subr.bf16.mxu0 0
    %783 = vmatpush1.bf16.msra.mxu0 %v764
    %784 = vmatprep.subr.bf16.mxu0 0
    %785 = vmatpush1.bf16.msra.mxu0 %v765
    %786 = vmatprep.subr.bf16.mxu0 0
    %787 = vmatpush1.bf16.msra.mxu0 %v766
    %788 = vmatprep.subr.bf16.mxu0 0
    %789 = vmatpush1.bf16.msra.mxu0 %v767
    %790 = vmatprep.subr.bf16.mxu0 0
    %791 = vmatpush1.bf16.msra.mxu0 %v768
    %792 = vmatprep.subr.bf16.mxu0 0
    %793 = vmatpush1.bf16.msra.mxu0 %v769
    %794 = vmatprep.subr.bf16.mxu0 0
    %795 = vmatpush1.bf16.msra.mxu0 0
    %796 = vmatprep.subr.bf16.mxu0 0
    %797 = vmatpush1.bf16.msra.mxu0 0
    %798 = vmatprep.subr.bf16.mxu0 0
    %799 = vmatpush1.bf16.msra.mxu0 0
    %800 = vmatprep.subr.bf16.mxu0 0
    %801 = vmatpush1.bf16.msra.mxu0 0
    %802 = vmatprep.subr.bf16.mxu0 0
    %803 = vmatpush1.bf16.msra.mxu0 0
    %804 = vmatprep.subr.bf16.mxu0 0
    %805 = vmatpush1.bf16.msra.mxu0 0
    %806 = vmatprep.subr.bf16.mxu0 0
    %807 = vmatpush1.bf16.msra.mxu0 0
    %808 = vmatprep.subr.bf16.mxu0 0
    %809 = vmatpush1.bf16.msra.mxu0 0
    %810 = vmatprep.mubr.bf16.mxu0 0
    %811 = vmatmul.mubr.bf16.gmra.mrb[0].mxu0 %v722
    %v812 = vpop.f32.mrb[0].mxu0
    %v813 = vadd.f32 %v729, %v812
    %v814 = vpop.f32.mrb[0].mxu0
    %v815 = vpop.f32.mrb[0].mxu0
    %v816 = vadd.f32 %v729, %v815
    %v817 = vpop.f32.mrb[0].mxu0
    %818 = vmatprep.mubr.bf16.mxu0 0
    %819 = vmatmul.mubr.bf16.gmra.mrb[0].mxu0 %v723
    %v820 = vpop.f32.mrb[0].mxu0
    %v821 = vadd.f32 %v729, %v820
    %v822 = vpop.f32.mrb[0].mxu0
    %v823 = vpop.f32.mrb[0].mxu0
    %v824 = vadd.f32 %v729, %v823
    %v825 = vpop.f32.mrb[0].mxu0
    %826 = vmatprep.mubr.bf16.mxu0 0
    %827 = vmatmul.mubr.bf16.gmra.mrb[0].mxu0 %v724
    %v828 = vpop.f32.mrb[0].mxu0
    %v829 = vadd.f32 %v729, %v828
    %v830 = vpop.f32.mrb[0].mxu0
    %v831 = vpop.f32.mrb[0].mxu0
    %v832 = vadd.f32 %v729, %v831
    %v833 = vpop.f32.mrb[0].mxu0
    %834 = vmatprep.mubr.bf16.mxu0 0
    %835 = vmatmul.mubr.bf16.gmra.mrb[0].mxu0 %v725
    %v836 = vpop.f32.mrb[0].mxu0
    %v837 = vadd.f32 %v729, %v836
    %v838 = vpop.f32.mrb[0].mxu0
    %v839 = vpop.f32.mrb[0].mxu0
    %v840 = vadd.f32 %v729, %v839
    %v841 = vpop.f32.mrb[0].mxu0
    %842 = vdwg.mxu0
    %v843 = vmax.f32 %v813, 0.0
    %v844 = vmax.f32 %v816, 0.0
    %v845 = vmax.f32 %v821, 0.0
    %v846 = vmax.f32 %v824, 0.0
    %v847 = vmax.f32 %v829, 0.0
    %v848 = vmax.f32 %v832, 0.0
    %v849 = vmax.f32 %v837, 0.0
    %v850 = vmax.f32 %v840, 0.0
    %v851 = vpack.c.bf16 %v844, %v843
    %v852 = vpack.c.bf16 %v846, %v845
    %v853 = vpack.c.bf16 %v848, %v847
    %v854 = vpack.c.bf16 %v850, %v849
    %855 = vmatprep.subr.bf16.mxu0 0
    %856 = vmatpush1.bf16.msra.mxu0 %v851
    %857 = vmatprep.subr.bf16.mxu0 0
    %858 = vmatpush1.bf16.msra.mxu0 %v852
    %859 = vmatprep.subr.bf16.mxu0 0
    %860 = vmatpush1.bf16.msra.mxu0 %v853
    %861 = vmatprep.subr.bf16.mxu0 0
    %862 = vmatpush1.bf16.msra.mxu0 %v854
    %863 = vmatprep.subr.bf16.mxu0 0
    %864 = vmatpush1.bf16.msra.mxu0 0
    %865 = vmatprep.subr.bf16.mxu0 0
    %866 = vmatpush1.bf16.msra.mxu0 0
    %867 = vmatprep.subr.bf16.mxu0 0
    %868 = vmatpush1.bf16.msra.mxu0 0
    %869 = vmatprep.subr.bf16.mxu0 0
    %870 = vmatpush1.bf16.msra.mxu0 0
    %871 = vmatprep.subr.bf16.mxu0 0
    %872 = vmatpush1.bf16.msra.mxu0 0
    %873 = vmatprep.subr.bf16.mxu0 0
    %874 = vmatpush1.bf16.msra.mxu0 0
    %875 = vmatprep.subr.bf16.mxu0 0
    %876 = vmatpush1.bf16.msra.mxu0 0
    %877 = vmatprep.subr.bf16.mxu0 0
    %878 = vmatpush1.bf16.msra.mxu0 0
    %879 = vmatprep.subr.bf16.mxu0 0
    %880 = vmatpush1.bf16.msra.mxu0 0
    %881 = vmatprep.subr.bf16.mxu0 0
    %882 = vmatpush1.bf16.msra.mxu0 0
    %883 = vmatprep.subr.bf16.mxu0 0
    %884 = vmatpush1.bf16.msra.mxu0 0
    %885 = vmatprep.subr.bf16.mxu0 0
    %886 = vmatpush1.bf16.msra.mxu0 0
    %887 = vmatprep.mubr.bf16.mxu0 0
    %888 = vmatmul.mubr.bf16.gmra.mrb[0].mxu0 %v202
    %v889 = vpop.f32.mrb[0].mxu0
    %v890 = vadd.f32 0.0, %v889
    %v891 = vpop.f32.mrb[0].mxu0
    %v892 = vpop.f32.mrb[0].mxu0
    %v893 = vadd.f32 0.0, %v892
    %v894 = vpop.f32.mrb[0].mxu0
    %895 = vmatprep.mubr.bf16.mxu0 0
    %896 = vmatmul.mubr.bf16.gmra.mrb[0].mxu0 %v205
    %v897 = vpop.f32.mrb[0].mxu0
    %v898 = vpop.f32.mrb[0].mxu0
    %v899 = vpop.f32.mrb[0].mxu0
    %v900 = vpop.f32.mrb[0].mxu0
    %901 = vdwg.mxu0
    %903 = vset.pattern.permute.xlu0 0
    %904 = vperm.xlu0 %903, %v256
    %v905 = vpop.permute.xlu0 %904
    %908 = vset.pattern.permute.xlu0 0
    %909 = vperm.xlu0 %908, %v257
    %v910 = vpop.permute.xlu0 %909
    %v912 = vmul.f32 %v890, %v905
    %v913 = vmul.f32 %v893, %v910
    %v914 = vld [vmem:[#allocation2 + $0x100] sm:$0xf]
    %v915 = vld [vmem:[#allocation2 + $0x104] sm:$0xf]
    %v916 = vld [vmem:[#allocation2 + $0x108] sm:$0xf]
    %v917 = vld [vmem:[#allocation2 + $0x10c] sm:$0xf]
    %v918 = vld [vmem:[#allocation2 + $0x110] sm:$0xf]
    %v919 = vld [vmem:[#allocation2 + $0x114] sm:$0xf]
    %v920 = vld [vmem:[#allocation2 + $0x118] sm:$0xf]
    %v921 = vld [vmem:[#allocation2 + $0x11c] sm:$0xf]
    %v922 = vld [vmem:[#allocation2 + $0x120] sm:$0xf]
    %v923 = vld [vmem:[#allocation2 + $0x124] sm:$0xf]
    %v924 = vld [vmem:[#allocation2 + $0x128] sm:$0xf]
    %v925 = vld [vmem:[#allocation2 + $0x12c] sm:$0xf]
    %v926 = vld [vmem:[#allocation2 + $0x130] sm:$0xf]
    %v927 = vld [vmem:[#allocation2 + $0x134] sm:$0xf]
    %v928 = vld [vmem:[#allocation2 + $0x138] sm:$0xf]
    %v929 = vld [vmem:[#allocation2 + $0x13c] sm:$0xf]
    %v930 = vld [vmem:[#allocation2 + $0x140] sm:$0xf]
    %v931 = vld [vmem:[#allocation2 + $0x144] sm:$0xf]
    %v932 = vld [vmem:[#allocation2 + $0x148] sm:$0xf]
    %v933 = vld [vmem:[#allocation2 + $0x14c] sm:$0xf]
    %v934 = vld [vmem:[#allocation2 + $0x150] sm:$0xf]
    %v935 = vld [vmem:[#allocation2 + $0x154] sm:$0xf]
    %v936 = vld [vmem:[#allocation2 + $0x158] sm:$0xf]
    %v937 = vld [vmem:[#allocation2 + $0x15c] sm:$0xf]
    %v938 = vld [vmem:[#allocation2 + $0x160] sm:$0xf]
    %v939 = vld [vmem:[#allocation2 + $0x164] sm:$0xf]
    %v940 = vld [vmem:[#allocation2 + $0x168] sm:$0xf]
    %v941 = vld [vmem:[#allocation2 + $0x16c] sm:$0xf]
    %v942 = vld [vmem:[#allocation2 + $0x170] sm:$0xf]
    %v943 = vld [vmem:[#allocation2 + $0x174] sm:$0xf]
    %v944 = vld [vmem:[#allocation2 + $0x178] sm:$0xf]
    %v945 = vld [vmem:[#allocation2 + $0x17c] sm:$0xf]
    %v946 = vld [vmem:[#allocation2 + $0x180] sm:$0xf]
    %v947 = vld [vmem:[#allocation2 + $0x184] sm:$0xf]
    %v948 = vld [vmem:[#allocation2 + $0x188] sm:$0xf]
    %v949 = vld [vmem:[#allocation2 + $0x18c] sm:$0xf]
    %v950 = vld [vmem:[#allocation2 + $0x190] sm:$0xf]
    %v951 = vld [vmem:[#allocation2 + $0x194] sm:$0xf]
    %v952 = vld [vmem:[#allocation2 + $0x198] sm:$0xf]
    %v953 = vld [vmem:[#allocation2 + $0x19c] sm:$0xf]
    %v954 = vld [vmem:[#allocation2 + $0x1a0] sm:$0xf]
    %v955 = vld [vmem:[#allocation2 + $0x1a4] sm:$0xf]
    %v956 = vld [vmem:[#allocation2 + $0x1a8] sm:$0xf]
    %v957 = vld [vmem:[#allocation2 + $0x1ac] sm:$0xf]
    %v958 = vld [vmem:[#allocation2 + $0x1b0] sm:$0xf]
    %v959 = vld [vmem:[#allocation2 + $0x1b4] sm:$0xf]
    %v960 = vld [vmem:[#allocation2 + $0x1b8] sm:$0xf]
    %v961 = vld [vmem:[#allocation2 + $0x1bc] sm:$0xf]
    %v962 = vld [vmem:[#allocation2 + $0x1c0] sm:$0xf]
    %v963 = vld [vmem:[#allocation2 + $0x1c4] sm:$0xf]
    %v964 = vld [vmem:[#allocation2 + $0x1c8] sm:$0xf]
    %v965 = vld [vmem:[#allocation2 + $0x1cc] sm:$0xf]
    %v966 = vld [vmem:[#allocation2 + $0x1d0] sm:$0xf]
    %v967 = vld [vmem:[#allocation2 + $0x1d4] sm:$0xf]
    %v968 = vld [vmem:[#allocation2 + $0x1d8] sm:$0xf]
    %v969 = vld [vmem:[#allocation2 + $0x1dc] sm:$0xf]
    %v970 = vld [vmem:[#allocation2 + $0x1e0] sm:$0xf]
    %v971 = vld [vmem:[#allocation2 + $0x1e4] sm:$0xf]
    %v972 = vld [vmem:[#allocation2 + $0x1e8] sm:$0xf]
    %v973 = vld [vmem:[#allocation2 + $0x1ec] sm:$0xf]
    %v974 = vld [vmem:[#allocation2 + $0x1f0] sm:$0xf]
    %v975 = vld [vmem:[#allocation2 + $0x1f4] sm:$0xf]
    %v976 = vld [vmem:[#allocation2 + $0x1f8] sm:$0xf]
    %v977 = vld [vmem:[#allocation2 + $0x1fc] sm:$0xf]
    %v978 = vpack.c.bf16 %v913, %v912
    %v995 = vunpack.c.l.b16 %v914
    %v996 = vunpack.c.l.b16 %v915
    %v997 = vunpack.c.l.b16 %v916
    %v998 = vunpack.c.l.b16 %v917
    %v999 = vunpack.c.l.b16 %v918
    %v1000 = vunpack.c.l.b16 %v919
    %v1001 = vunpack.c.l.b16 %v920
    %v1002 = vunpack.c.l.b16 %v921
    %v1003 = vunpack.c.l.b16 %v922
    %v1004 = vunpack.c.l.b16 %v923
    %v1005 = vunpack.c.l.b16 %v924
    %v1006 = vunpack.c.l.b16 %v925
    %v1007 = vunpack.c.l.b16 %v926
    %v1008 = vunpack.c.l.b16 %v927
    %v1009 = vunpack.c.l.b16 %v928
    %v1010 = vunpack.c.l.b16 %v929
    %v1011 = vpack.c.b16 %v996, %v995
    %v1012 = vpack.c.b16 %v998, %v997
    %v1013 = vpack.c.b16 %v1000, %v999
    %v1014 = vpack.c.b16 %v1002, %v1001
    %v1015 = vpack.c.b16 %v1004, %v1003
    %v1016 = vpack.c.b16 %v1006, %v1005
    %v1017 = vpack.c.b16 %v1008, %v1007
    %v1018 = vpack.c.b16 %v1010, %v1009
    %1027 = vmatprep.subr.bf16.mxu0 0
    %1028 = vmatpush1.bf16.msra.mxu0 %v1011
    %1029 = vmatprep.subr.bf16.mxu0 0
    %1030 = vmatpush1.bf16.msra.mxu0 %v1012
    %1031 = vmatprep.subr.bf16.mxu0 0
    %1032 = vmatpush1.bf16.msra.mxu0 %v1013
    %1033 = vmatprep.subr.bf16.mxu0 0
    %1034 = vmatpush1.bf16.msra.mxu0 %v1014
    %1035 = vmatprep.subr.bf16.mxu0 0
    %1036 = vmatpush1.bf16.msra.mxu0 %v1015
    %1037 = vmatprep.subr.bf16.mxu0 0
    %1038 = vmatpush1.bf16.msra.mxu0 %v1016
    %1039 = vmatprep.subr.bf16.mxu0 0
    %1040 = vmatpush1.bf16.msra.mxu0 %v1017
    %1041 = vmatprep.subr.bf16.mxu0 0
    %1042 = vmatpush1.bf16.msra.mxu0 %v1018
    %1043 = vmatprep.subr.bf16.mxu0 0
    %1044 = vmatpush1.bf16.msra.mxu0 0
    %1045 = vmatprep.subr.bf16.mxu0 0
    %1046 = vmatpush1.bf16.msra.mxu0 0
    %1047 = vmatprep.subr.bf16.mxu0 0
    %1048 = vmatpush1.bf16.msra.mxu0 0
    %1049 = vmatprep.subr.bf16.mxu0 0
    %1050 = vmatpush1.bf16.msra.mxu0 0
    %1051 = vmatprep.subr.bf16.mxu0 0
    %1052 = vmatpush1.bf16.msra.mxu0 0
    %1053 = vmatprep.subr.bf16.mxu0 0
    %1054 = vmatpush1.bf16.msra.mxu0 0
    %1055 = vmatprep.subr.bf16.mxu0 0
    %1056 = vmatpush1.bf16.msra.mxu0 0
    %1057 = vmatprep.subr.bf16.mxu0 0
    %1058 = vmatpush1.bf16.msra.mxu0 0
    %1059 = vmatprep.mubr.bf16.mxu0 0
    %1060 = vmatmul.mubr.bf16.gmra.mrb[0].mxu0 %v978
    %v1061 = vpop.f32.mrb[0].mxu0
    %v1062 = vadd.f32 0.0, %v1061
    %v1063 = vpop.f32.mrb[0].mxu0
    %v1064 = vpop.f32.mrb[0].mxu0
    %v1065 = vadd.f32 0.0, %v1064
    %v1066 = vpop.f32.mrb[0].mxu0
    %1067 = vdwg.mxu0
    %v1084 = vunpack.c.l.b16 %v930
    %v1085 = vunpack.c.l.b16 %v931
    %v1086 = vunpack.c.l.b16 %v932
    %v1087 = vunpack.c.l.b16 %v933
    %v1088 = vunpack.c.l.b16 %v934
    %v1089 = vunpack.c.l.b16 %v935
    %v1090 = vunpack.c.l.b16 %v936
    %v1091 = vunpack.c.l.b16 %v937
    %v1092 = vunpack.c.l.b16 %v938
    %v1093 = vunpack.c.l.b16 %v939
    %v1094 = vunpack.c.l.b16 %v940
    %v1095 = vunpack.c.l.b16 %v941
    %v1096 = vunpack.c.l.b16 %v942
    %v1097 = vunpack.c.l.b16 %v943
    %v1098 = vunpack.c.l.b16 %v944
    %v1099 = vunpack.c.l.b16 %v945
    %v1100 = vpack.c.b16 %v1085, %v1084
    %v1101 = vpack.c.b16 %v1087, %v1086
    %v1102 = vpack.c.b16 %v1089, %v1088
    %v1103 = vpack.c.b16 %v1091, %v1090
    %v1104 = vpack.c.b16 %v1093, %v1092
    %v1105 = vpack.c.b16 %v1095, %v1094
    %v1106 = vpack.c.b16 %v1097, %v1096
    %v1107 = vpack.c.b16 %v1099, %v1098
    %1116 = vmatprep.subr.bf16.mxu0 0
    %1117 = vmatpush1.bf16.msra.mxu0 %v1100
    %1118 = vmatprep.subr.bf16.mxu0 0
    %1119 = vmatpush1.bf16.msra.mxu0 %v1101
    %1120 = vmatprep.subr.bf16.mxu0 0
    %1121 = vmatpush1.bf16.msra.mxu0 %v1102
    %1122 = vmatprep.subr.bf16.mxu0 0
    %1123 = vmatpush1.bf16.msra.mxu0 %v1103
    %1124 = vmatprep.subr.bf16.mxu0 0
    %1125 = vmatpush1.bf16.msra.mxu0 %v1104
    %1126 = vmatprep.subr.bf16.mxu0 0
    %1127 = vmatpush1.bf16.msra.mxu0 %v1105
    %1128 = vmatprep.subr.bf16.mxu0 0
    %1129 = vmatpush1.bf16.msra.mxu0 %v1106
    %1130 = vmatprep.subr.bf16.mxu0 0
    %1131 = vmatpush1.bf16.msra.mxu0 %v1107
    %1132 = vmatprep.subr.bf16.mxu0 0
    %1133 = vmatpush1.bf16.msra.mxu0 0
    %1134 = vmatprep.subr.bf16.mxu0 0
    %1135 = vmatpush1.bf16.msra.mxu0 0
    %1136 = vmatprep.subr.bf16.mxu0 0
    %1137 = vmatpush1.bf16.msra.mxu0 0
    %1138 = vmatprep.subr.bf16.mxu0 0
    %1139 = vmatpush1.bf16.msra.mxu0 0
    %1140 = vmatprep.subr.bf16.mxu0 0
    %1141 = vmatpush1.bf16.msra.mxu0 0
    %1142 = vmatprep.subr.bf16.mxu0 0
    %1143 = vmatpush1.bf16.msra.mxu0 0
    %1144 = vmatprep.subr.bf16.mxu0 0
    %1145 = vmatpush1.bf16.msra.mxu0 0
    %1146 = vmatprep.subr.bf16.mxu0 0
    %1147 = vmatpush1.bf16.msra.mxu0 0
    %1148 = vmatprep.mubr.bf16.mxu0 0
    %1149 = vmatmul.mubr.bf16.gmra.mrb[0].mxu0 %v978
    %v1150 = vpop.f32.mrb[0].mxu0
    %v1151 = vadd.f32 0.0, %v1150
    %v1152 = vpop.f32.mrb[0].mxu0
    %v1153 = vpop.f32.mrb[0].mxu0
    %v1154 = vadd.f32 0.0, %v1153
    %v1155 = vpop.f32.mrb[0].mxu0
    %1156 = vdwg.mxu0
    %v1157 = vpack.c.bf16 %v1065, %v1062
    %v1158 = vpack.c.bf16 %v1154, %v1151
    %v1159 = vlaneseq
    %v1160 = vshrl.u32 %v1159, 7
    %v1161 = vsub.s32 3, %v1160
    %v1162 = vrot.slane %v34, %v1161
    %1163 = vmatprep.subr.bf16.mxu0 0
    %1164 = vmatpush1.bf16.msra.mxu0 %v1157
    %1165 = vmatprep.subr.bf16.mxu0 0
    %1166 = vmatpush1.bf16.msra.mxu0 %v1158
    %1167 = vmatprep.subr.bf16.mxu0 0
    %1168 = vmatpush1.bf16.msra.mxu0 0
    %1169 = vmatprep.subr.bf16.mxu0 0
    %1170 = vmatpush1.bf16.msra.mxu0 0
    %1171 = vmatprep.subr.bf16.mxu0 0
    %1172 = vmatpush1.bf16.msra.mxu0 0
    %1173 = vmatprep.subr.bf16.mxu0 0
    %1174 = vmatpush1.bf16.msra.mxu0 0
    %1175 = vmatprep.subr.bf16.mxu0 0
    %1176 = vmatpush1.bf16.msra.mxu0 0
    %1177 = vmatprep.subr.bf16.mxu0 0
    %1178 = vmatpush1.bf16.msra.mxu0 0
    %1179 = vmatprep.subr.bf16.mxu0 0
    %1180 = vmatpush1.bf16.msra.mxu0 0
    %1181 = vmatprep.subr.bf16.mxu0 0
    %1182 = vmatpush1.bf16.msra.mxu0 0
    %1183 = vmatprep.subr.bf16.mxu0 0
    %1184 = vmatpush1.bf16.msra.mxu0 0
    %1185 = vmatprep.subr.bf16.mxu0 0
    %1186 = vmatpush1.bf16.msra.mxu0 0
    %1187 = vmatprep.subr.bf16.mxu0 0
    %1188 = vmatpush1.bf16.msra.mxu0 0
    %1189 = vmatprep.subr.bf16.mxu0 0
    %1190 = vmatpush1.bf16.msra.mxu0 0
    %1191 = vmatprep.subr.bf16.mxu0 0
    %1192 = vmatpush1.bf16.msra.mxu0 0
    %1193 = vmatprep.subr.bf16.mxu0 0
    %1194 = vmatpush1.bf16.msra.mxu0 0
    %1195 = vmatprep.mubr.bf16.mxu0 0
    %1196 = vmatmul.mubr.bf16.gmra.mrb[0].mxu0 %v509
    %v1197 = vpop.f32.mrb[0].mxu0
    %v1198 = vadd.f32 %v1162, %v1197
    %v1199 = vpop.f32.mrb[0].mxu0
    %v1200 = vpop.f32.mrb[0].mxu0
    %v1201 = vadd.f32 %v1162, %v1200
    %v1202 = vpop.f32.mrb[0].mxu0
    %1203 = vmatprep.mubr.bf16.mxu0 0
    %1204 = vmatmul.mubr.bf16.gmra.mrb[0].mxu0 %v512
    %v1205 = vpop.f32.mrb[0].mxu0
    %v1206 = vadd.f32 %v1162, %v1205
    %v1207 = vpop.f32.mrb[0].mxu0
    %v1208 = vpop.f32.mrb[0].mxu0
    %v1209 = vadd.f32 %v1162, %v1208
    %v1210 = vpop.f32.mrb[0].mxu0
    %1211 = vmatprep.mubr.bf16.mxu0 0
    %1212 = vmatmul.mubr.bf16.gmra.mrb[0].mxu0 %v515
    %v1213 = vpop.f32.mrb[0].mxu0
    %v1214 = vadd.f32 %v1162, %v1213
    %v1215 = vpop.f32.mrb[0].mxu0
    %v1216 = vpop.f32.mrb[0].mxu0
    %v1217 = vadd.f32 %v1162, %v1216
    %v1218 = vpop.f32.mrb[0].mxu0
    %1219 = vmatprep.mubr.bf16.mxu0 0
    %1220 = vmatmul.mubr.bf16.gmra.mrb[0].mxu0 %v518
    %v1221 = vpop.f32.mrb[0].mxu0
    %v1222 = vadd.f32 %v1162, %v1221
    %v1223 = vpop.f32.mrb[0].mxu0
    %v1224 = vpop.f32.mrb[0].mxu0
    %v1225 = vadd.f32 %v1162, %v1224
    %v1226 = vpop.f32.mrb[0].mxu0
    %1227 = vdwg.mxu0
    %v1228 = vmax.f32 %v1198, 0.0
    %v1229 = vmax.f32 %v1201, 0.0
    %v1230 = vmax.f32 %v1206, 0.0
    %v1231 = vmax.f32 %v1209, 0.0
    %v1232 = vmax.f32 %v1214, 0.0
    %v1233 = vmax.f32 %v1217, 0.0
    %v1234 = vmax.f32 %v1222, 0.0
    %v1235 = vmax.f32 %v1225, 0.0
    %v1236 = vpack.c.bf16 %v1229, %v1228
    %v1237 = vpack.c.bf16 %v1231, %v1230
    %v1238 = vpack.c.bf16 %v1233, %v1232
    %v1239 = vpack.c.bf16 %v1235, %v1234
    %v1240 = vlaneseq
    %v1241 = vshrl.u32 %v1240, 7
    %v1242 = vsub.s32 4, %v1241
    %v1243 = vrot.slane %v34, %v1242
    %v1260 = vunpack.c.l.b16 %v946
    %v1261 = vunpack.c.l.b16 %v947
    %v1262 = vunpack.c.l.b16 %v948
    %v1263 = vunpack.c.l.b16 %v949
    %v1264 = vunpack.c.l.b16 %v950
    %v1265 = vunpack.c.l.b16 %v951
    %v1266 = vunpack.c.l.b16 %v952
    %v1267 = vunpack.c.l.b16 %v953
    %v1268 = vunpack.c.l.b16 %v954
    %v1269 = vunpack.c.l.b16 %v955
    %v1270 = vunpack.c.l.b16 %v956
    %v1271 = vunpack.c.l.b16 %v957
    %v1272 = vunpack.c.l.b16 %v958
    %v1273 = vunpack.c.l.b16 %v959
    %v1274 = vunpack.c.l.b16 %v960
    %v1275 = vunpack.c.l.b16 %v961
    %v1276 = vpack.c.b16 %v1261, %v1260
    %v1277 = vpack.c.b16 %v1263, %v1262
    %v1278 = vpack.c.b16 %v1265, %v1264
    %v1279 = vpack.c.b16 %v1267, %v1266
    %v1280 = vpack.c.b16 %v1269, %v1268
    %v1281 = vpack.c.b16 %v1271, %v1270
    %v1282 = vpack.c.b16 %v1273, %v1272
    %v1283 = vpack.c.b16 %v1275, %v1274
    %1292 = vmatprep.subr.bf16.mxu0 0
    %1293 = vmatpush1.bf16.msra.mxu0 %v1276
    %1294 = vmatprep.subr.bf16.mxu0 0
    %1295 = vmatpush1.bf16.msra.mxu0 %v1277
    %1296 = vmatprep.subr.bf16.mxu0 0
    %1297 = vmatpush1.bf16.msra.mxu0 %v1278
    %1298 = vmatprep.subr.bf16.mxu0 0
    %1299 = vmatpush1.bf16.msra.mxu0 %v1279
    %1300 = vmatprep.subr.bf16.mxu0 0
    %1301 = vmatpush1.bf16.msra.mxu0 %v1280
    %1302 = vmatprep.subr.bf16.mxu0 0
    %1303 = vmatpush1.bf16.msra.mxu0 %v1281
    %1304 = vmatprep.subr.bf16.mxu0 0
    %1305 = vmatpush1.bf16.msra.mxu0 %v1282
    %1306 = vmatprep.subr.bf16.mxu0 0
    %1307 = vmatpush1.bf16.msra.mxu0 %v1283
    %1308 = vmatprep.subr.bf16.mxu0 0
    %1309 = vmatpush1.bf16.msra.mxu0 0
    %1310 = vmatprep.subr.bf16.mxu0 0
    %1311 = vmatpush1.bf16.msra.mxu0 0
    %1312 = vmatprep.subr.bf16.mxu0 0
    %1313 = vmatpush1.bf16.msra.mxu0 0
    %1314 = vmatprep.subr.bf16.mxu0 0
    %1315 = vmatpush1.bf16.msra.mxu0 0
    %1316 = vmatprep.subr.bf16.mxu0 0
    %1317 = vmatpush1.bf16.msra.mxu0 0
    %1318 = vmatprep.subr.bf16.mxu0 0
    %1319 = vmatpush1.bf16.msra.mxu0 0
    %1320 = vmatprep.subr.bf16.mxu0 0
    %1321 = vmatpush1.bf16.msra.mxu0 0
    %1322 = vmatprep.subr.bf16.mxu0 0
    %1323 = vmatpush1.bf16.msra.mxu0 0
    %1324 = vmatprep.mubr.bf16.mxu0 0
    %1325 = vmatmul.mubr.bf16.gmra.mrb[0].mxu0 %v1236
    %v1326 = vpop.f32.mrb[0].mxu0
    %v1327 = vadd.f32 %v1243, %v1326
    %v1328 = vpop.f32.mrb[0].mxu0
    %v1329 = vpop.f32.mrb[0].mxu0
    %v1330 = vadd.f32 %v1243, %v1329
    %v1331 = vpop.f32.mrb[0].mxu0
    %1332 = vmatprep.mubr.bf16.mxu0 0
    %1333 = vmatmul.mubr.bf16.gmra.mrb[0].mxu0 %v1237
    %v1334 = vpop.f32.mrb[0].mxu0
    %v1335 = vadd.f32 %v1243, %v1334
    %v1336 = vpop.f32.mrb[0].mxu0
    %v1337 = vpop.f32.mrb[0].mxu0
    %v1338 = vadd.f32 %v1243, %v1337
    %v1339 = vpop.f32.mrb[0].mxu0
    %1340 = vmatprep.mubr.bf16.mxu0 0
    %1341 = vmatmul.mubr.bf16.gmra.mrb[0].mxu0 %v1238
    %v1342 = vpop.f32.mrb[0].mxu0
    %v1343 = vadd.f32 %v1243, %v1342
    %v1344 = vpop.f32.mrb[0].mxu0
    %v1345 = vpop.f32.mrb[0].mxu0
    %v1346 = vadd.f32 %v1243, %v1345
    %v1347 = vpop.f32.mrb[0].mxu0
    %1348 = vmatprep.mubr.bf16.mxu0 0
    %1349 = vmatmul.mubr.bf16.gmra.mrb[0].mxu0 %v1239
    %v1350 = vpop.f32.mrb[0].mxu0
    %v1351 = vadd.f32 %v1243, %v1350
    %v1352 = vpop.f32.mrb[0].mxu0
    %v1353 = vpop.f32.mrb[0].mxu0
    %v1354 = vadd.f32 %v1243, %v1353
    %v1355 = vpop.f32.mrb[0].mxu0
    %1356 = vdwg.mxu0
    %v1357 = vmax.f32 %v1327, 0.0
    %v1358 = vmax.f32 %v1330, 0.0
    %v1359 = vmax.f32 %v1335, 0.0
    %v1360 = vmax.f32 %v1338, 0.0
    %v1361 = vmax.f32 %v1343, 0.0
    %v1362 = vmax.f32 %v1346, 0.0
    %v1363 = vmax.f32 %v1351, 0.0
    %v1364 = vmax.f32 %v1354, 0.0
    %v1365 = vpack.c.bf16 %v1358, %v1357
    %v1366 = vpack.c.bf16 %v1360, %v1359
    %v1367 = vpack.c.bf16 %v1362, %v1361
    %v1368 = vpack.c.bf16 %v1364, %v1363
    %v1369 = vlaneseq
    %v1370 = vshrl.u32 %v1369, 7
    %v1371 = vsub.s32 5, %v1370
    %v1372 = vrot.slane %v34, %v1371
    %v1389 = vunpack.c.l.b16 %v962
    %v1390 = vunpack.c.l.b16 %v963
    %v1391 = vunpack.c.l.b16 %v964
    %v1392 = vunpack.c.l.b16 %v965
    %v1393 = vunpack.c.l.b16 %v966
    %v1394 = vunpack.c.l.b16 %v967
    %v1395 = vunpack.c.l.b16 %v968
    %v1396 = vunpack.c.l.b16 %v969
    %v1397 = vunpack.c.l.b16 %v970
    %v1398 = vunpack.c.l.b16 %v971
    %v1399 = vunpack.c.l.b16 %v972
    %v1400 = vunpack.c.l.b16 %v973
    %v1401 = vunpack.c.l.b16 %v974
    %v1402 = vunpack.c.l.b16 %v975
    %v1403 = vunpack.c.l.b16 %v976
    %v1404 = vunpack.c.l.b16 %v977
    %v1405 = vpack.c.b16 %v1390, %v1389
    %v1406 = vpack.c.b16 %v1392, %v1391
    %v1407 = vpack.c.b16 %v1394, %v1393
    %v1408 = vpack.c.b16 %v1396, %v1395
    %v1409 = vpack.c.b16 %v1398, %v1397
    %v1410 = vpack.c.b16 %v1400, %v1399
    %v1411 = vpack.c.b16 %v1402, %v1401
    %v1412 = vpack.c.b16 %v1404, %v1403
    %1421 = vmatprep.subr.bf16.mxu0 0
    %1422 = vmatpush1.bf16.msra.mxu0 %v1405
    %1423 = vmatprep.subr.bf16.mxu0 0
    %1424 = vmatpush1.bf16.msra.mxu0 %v1406
    %1425 = vmatprep.subr.bf16.mxu0 0
    %1426 = vmatpush1.bf16.msra.mxu0 %v1407
    %1427 = vmatprep.subr.bf16.mxu0 0
    %1428 = vmatpush1.bf16.msra.mxu0 %v1408
    %1429 = vmatprep.subr.bf16.mxu0 0
    %1430 = vmatpush1.bf16.msra.mxu0 %v1409
    %1431 = vmatprep.subr.bf16.mxu0 0
    %1432 = vmatpush1.bf16.msra.mxu0 %v1410
    %1433 = vmatprep.subr.bf16.mxu0 0
    %1434 = vmatpush1.bf16.msra.mxu0 %v1411
    %1435 = vmatprep.subr.bf16.mxu0 0
    %1436 = vmatpush1.bf16.msra.mxu0 %v1412
    %1437 = vmatprep.subr.bf16.mxu0 0
    %1438 = vmatpush1.bf16.msra.mxu0 0
    %1439 = vmatprep.subr.bf16.mxu0 0
    %1440 = vmatpush1.bf16.msra.mxu0 0
    %1441 = vmatprep.subr.bf16.mxu0 0
    %1442 = vmatpush1.bf16.msra.mxu0 0
    %1443 = vmatprep.subr.bf16.mxu0 0
    %1444 = vmatpush1.bf16.msra.mxu0 0
    %1445 = vmatprep.subr.bf16.mxu0 0
    %1446 = vmatpush1.bf16.msra.mxu0 0
    %1447 = vmatprep.subr.bf16.mxu0 0
    %1448 = vmatpush1.bf16.msra.mxu0 0
    %1449 = vmatprep.subr.bf16.mxu0 0
    %1450 = vmatpush1.bf16.msra.mxu0 0
    %1451 = vmatprep.subr.bf16.mxu0 0
    %1452 = vmatpush1.bf16.msra.mxu0 0
    %1453 = vmatprep.mubr.bf16.mxu0 0
    %1454 = vmatmul.mubr.bf16.gmra.mrb[0].mxu0 %v1365
    %v1455 = vpop.f32.mrb[0].mxu0
    %v1456 = vadd.f32 %v1372, %v1455
    %v1457 = vpop.f32.mrb[0].mxu0
    %v1458 = vpop.f32.mrb[0].mxu0
    %v1459 = vadd.f32 %v1372, %v1458
    %v1460 = vpop.f32.mrb[0].mxu0
    %1461 = vmatprep.mubr.bf16.mxu0 0
    %1462 = vmatmul.mubr.bf16.gmra.mrb[0].mxu0 %v1366
    %v1463 = vpop.f32.mrb[0].mxu0
    %v1464 = vadd.f32 %v1372, %v1463
    %v1465 = vpop.f32.mrb[0].mxu0
    %v1466 = vpop.f32.mrb[0].mxu0
    %v1467 = vadd.f32 %v1372, %v1466
    %v1468 = vpop.f32.mrb[0].mxu0
    %1469 = vmatprep.mubr.bf16.mxu0 0
    %1470 = vmatmul.mubr.bf16.gmra.mrb[0].mxu0 %v1367
    %v1471 = vpop.f32.mrb[0].mxu0
    %v1472 = vadd.f32 %v1372, %v1471
    %v1473 = vpop.f32.mrb[0].mxu0
    %v1474 = vpop.f32.mrb[0].mxu0
    %v1475 = vadd.f32 %v1372, %v1474
    %v1476 = vpop.f32.mrb[0].mxu0
    %1477 = vmatprep.mubr.bf16.mxu0 0
    %1478 = vmatmul.mubr.bf16.gmra.mrb[0].mxu0 %v1368
    %v1479 = vpop.f32.mrb[0].mxu0
    %v1480 = vadd.f32 %v1372, %v1479
    %v1481 = vpop.f32.mrb[0].mxu0
    %v1482 = vpop.f32.mrb[0].mxu0
    %v1483 = vadd.f32 %v1372, %v1482
    %v1484 = vpop.f32.mrb[0].mxu0
    %1485 = vdwg.mxu0
    %v1486 = vmax.f32 %v1456, 0.0
    %v1487 = vmax.f32 %v1459, 0.0
    %v1488 = vmax.f32 %v1464, 0.0
    %v1489 = vmax.f32 %v1467, 0.0
    %v1490 = vmax.f32 %v1472, 0.0
    %v1491 = vmax.f32 %v1475, 0.0
    %v1492 = vmax.f32 %v1480, 0.0
    %v1493 = vmax.f32 %v1483, 0.0
    %v1494 = vpack.c.bf16 %v1487, %v1486
    %v1495 = vpack.c.bf16 %v1489, %v1488
    %v1496 = vpack.c.bf16 %v1491, %v1490
    %v1497 = vpack.c.bf16 %v1493, %v1492
    %1498 = vmatprep.subr.bf16.mxu0 0
    %1499 = vmatpush1.bf16.msra.mxu0 %v1494
    %1500 = vmatprep.subr.bf16.mxu0 0
    %1501 = vmatpush1.bf16.msra.mxu0 %v1495
    %1502 = vmatprep.subr.bf16.mxu0 0
    %1503 = vmatpush1.bf16.msra.mxu0 %v1496
    %1504 = vmatprep.subr.bf16.mxu0 0
    %1505 = vmatpush1.bf16.msra.mxu0 %v1497
    %1506 = vmatprep.subr.bf16.mxu0 0
    %1507 = vmatpush1.bf16.msra.mxu0 0
    %1508 = vmatprep.subr.bf16.mxu0 0
    %1509 = vmatpush1.bf16.msra.mxu0 0
    %1510 = vmatprep.subr.bf16.mxu0 0
    %1511 = vmatpush1.bf16.msra.mxu0 0
    %1512 = vmatprep.subr.bf16.mxu0 0
    %1513 = vmatpush1.bf16.msra.mxu0 0
    %1514 = vmatprep.subr.bf16.mxu0 0
    %1515 = vmatpush1.bf16.msra.mxu0 0
    %1516 = vmatprep.subr.bf16.mxu0 0
    %1517 = vmatpush1.bf16.msra.mxu0 0
    %1518 = vmatprep.subr.bf16.mxu0 0
    %1519 = vmatpush1.bf16.msra.mxu0 0
    %1520 = vmatprep.subr.bf16.mxu0 0
    %1521 = vmatpush1.bf16.msra.mxu0 0
    %1522 = vmatprep.subr.bf16.mxu0 0
    %1523 = vmatpush1.bf16.msra.mxu0 0
    %1524 = vmatprep.subr.bf16.mxu0 0
    %1525 = vmatpush1.bf16.msra.mxu0 0
    %1526 = vmatprep.subr.bf16.mxu0 0
    %1527 = vmatpush1.bf16.msra.mxu0 0
    %1528 = vmatprep.subr.bf16.mxu0 0
    %1529 = vmatpush1.bf16.msra.mxu0 0
    %1530 = vmatprep.mubr.bf16.mxu0 0
    %1531 = vmatmul.mubr.bf16.gmra.mrb[0].mxu0 %v202
    %v1532 = vpop.f32.mrb[0].mxu0
    %v1533 = vadd.f32 0.0, %v1532
    %v1534 = vpop.f32.mrb[0].mxu0
    %v1535 = vpop.f32.mrb[0].mxu0
    %v1536 = vadd.f32 0.0, %v1535
    %v1537 = vpop.f32.mrb[0].mxu0
    %1538 = vmatprep.mubr.bf16.mxu0 0
    %1539 = vmatmul.mubr.bf16.gmra.mrb[0].mxu0 %v205
    %v1540 = vpop.f32.mrb[0].mxu0
    %v1541 = vpop.f32.mrb[0].mxu0
    %v1542 = vpop.f32.mrb[0].mxu0
    %v1543 = vpop.f32.mrb[0].mxu0
    %1544 = vdwg.mxu0
    %v1545 = vmul.f32 %v1533, %v905
    %v1546 = vmul.f32 %v1536, %v910
    %v1547 = vld [vmem:[#allocation2 + $0x200] sm:$0xf]
    %v1548 = vld [vmem:[#allocation2 + $0x204] sm:$0xf]
    %v1549 = vld [vmem:[#allocation2 + $0x208] sm:$0xf]
    %v1550 = vld [vmem:[#allocation2 + $0x20c] sm:$0xf]
    %v1551 = vld [vmem:[#allocation2 + $0x210] sm:$0xf]
    %v1552 = vld [vmem:[#allocation2 + $0x214] sm:$0xf]
    %v1553 = vld [vmem:[#allocation2 + $0x218] sm:$0xf]
    %v1554 = vld [vmem:[#allocation2 + $0x21c] sm:$0xf]
    %v1555 = vld [vmem:[#allocation2 + $0x220] sm:$0xf]
    %v1556 = vld [vmem:[#allocation2 + $0x224] sm:$0xf]
    %v1557 = vld [vmem:[#allocation2 + $0x228] sm:$0xf]
    %v1558 = vld [vmem:[#allocation2 + $0x22c] sm:$0xf]
    %v1559 = vld [vmem:[#allocation2 + $0x230] sm:$0xf]
    %v1560 = vld [vmem:[#allocation2 + $0x234] sm:$0xf]
    %v1561 = vld [vmem:[#allocation2 + $0x238] sm:$0xf]
    %v1562 = vld [vmem:[#allocation2 + $0x23c] sm:$0xf]
    %v1563 = vld [vmem:[#allocation2 + $0x240] sm:$0xf]
    %v1564 = vld [vmem:[#allocation2 + $0x244] sm:$0xf]
    %v1565 = vld [vmem:[#allocation2 + $0x248] sm:$0xf]
    %v1566 = vld [vmem:[#allocation2 + $0x24c] sm:$0xf]
    %v1567 = vld [vmem:[#allocation2 + $0x250] sm:$0xf]
    %v1568 = vld [vmem:[#allocation2 + $0x254] sm:$0xf]
    %v1569 = vld [vmem:[#allocation2 + $0x258] sm:$0xf]
    %v1570 = vld [vmem:[#allocation2 + $0x25c] sm:$0xf]
    %v1571 = vld [vmem:[#allocation2 + $0x260] sm:$0xf]
    %v1572 = vld [vmem:[#allocation2 + $0x264] sm:$0xf]
    %v1573 = vld [vmem:[#allocation2 + $0x268] sm:$0xf]
    %v1574 = vld [vmem:[#allocation2 + $0x26c] sm:$0xf]
    %v1575 = vld [vmem:[#allocation2 + $0x270] sm:$0xf]
    %v1576 = vld [vmem:[#allocation2 + $0x274] sm:$0xf]
    %v1577 = vld [vmem:[#allocation2 + $0x278] sm:$0xf]
    %v1578 = vld [vmem:[#allocation2 + $0x27c] sm:$0xf]
    %v1579 = vld [vmem:[#allocation2 + $0x280] sm:$0xf]
    %v1580 = vld [vmem:[#allocation2 + $0x284] sm:$0xf]
    %v1581 = vld [vmem:[#allocation2 + $0x288] sm:$0xf]
    %v1582 = vld [vmem:[#allocation2 + $0x28c] sm:$0xf]
    %v1583 = vld [vmem:[#allocation2 + $0x290] sm:$0xf]
    %v1584 = vld [vmem:[#allocation2 + $0x294] sm:$0xf]
    %v1585 = vld [vmem:[#allocation2 + $0x298] sm:$0xf]
    %v1586 = vld [vmem:[#allocation2 + $0x29c] sm:$0xf]
    %v1587 = vld [vmem:[#allocation2 + $0x2a0] sm:$0xf]
    %v1588 = vld [vmem:[#allocation2 + $0x2a4] sm:$0xf]
    %v1589 = vld [vmem:[#allocation2 + $0x2a8] sm:$0xf]
    %v1590 = vld [vmem:[#allocation2 + $0x2ac] sm:$0xf]
    %v1591 = vld [vmem:[#allocation2 + $0x2b0] sm:$0xf]
    %v1592 = vld [vmem:[#allocation2 + $0x2b4] sm:$0xf]
    %v1593 = vld [vmem:[#allocation2 + $0x2b8] sm:$0xf]
    %v1594 = vld [vmem:[#allocation2 + $0x2bc] sm:$0xf]
    %v1595 = vld [vmem:[#allocation2 + $0x2c0] sm:$0xf]
    %v1596 = vld [vmem:[#allocation2 + $0x2c4] sm:$0xf]
    %v1597 = vld [vmem:[#allocation2 + $0x2c8] sm:$0xf]
    %v1598 = vld [vmem:[#allocation2 + $0x2cc] sm:$0xf]
    %v1599 = vld [vmem:[#allocation2 + $0x2d0] sm:$0xf]
    %v1600 = vld [vmem:[#allocation2 + $0x2d4] sm:$0xf]
    %v1601 = vld [vmem:[#allocation2 + $0x2d8] sm:$0xf]
    %v1602 = vld [vmem:[#allocation2 + $0x2dc] sm:$0xf]
    %v1603 = vld [vmem:[#allocation2 + $0x2e0] sm:$0xf]
    %v1604 = vld [vmem:[#allocation2 + $0x2e4] sm:$0xf]
    %v1605 = vld [vmem:[#allocation2 + $0x2e8] sm:$0xf]
    %v1606 = vld [vmem:[#allocation2 + $0x2ec] sm:$0xf]
    %v1607 = vld [vmem:[#allocation2 + $0x2f0] sm:$0xf]
    %v1608 = vld [vmem:[#allocation2 + $0x2f4] sm:$0xf]
    %v1609 = vld [vmem:[#allocation2 + $0x2f8] sm:$0xf]
    %v1610 = vld [vmem:[#allocation2 + $0x2fc] sm:$0xf]
    %v1611 = vpack.c.bf16 %v1546, %v1545
    %v1628 = vunpack.c.l.b16 %v1547
    %v1629 = vunpack.c.l.b16 %v1548
    %v1630 = vunpack.c.l.b16 %v1549
    %v1631 = vunpack.c.l.b16 %v1550
    %v1632 = vunpack.c.l.b16 %v1551
    %v1633 = vunpack.c.l.b16 %v1552
    %v1634 = vunpack.c.l.b16 %v1553
    %v1635 = vunpack.c.l.b16 %v1554
    %v1636 = vunpack.c.l.b16 %v1555
    %v1637 = vunpack.c.l.b16 %v1556
    %v1638 = vunpack.c.l.b16 %v1557
    %v1639 = vunpack.c.l.b16 %v1558
    %v1640 = vunpack.c.l.b16 %v1559
    %v1641 = vunpack.c.l.b16 %v1560
    %v1642 = vunpack.c.l.b16 %v1561
    %v1643 = vunpack.c.l.b16 %v1562
    %v1644 = vpack.c.b16 %v1629, %v1628
    %v1645 = vpack.c.b16 %v1631, %v1630
    %v1646 = vpack.c.b16 %v1633, %v1632
    %v1647 = vpack.c.b16 %v1635, %v1634
    %v1648 = vpack.c.b16 %v1637, %v1636
    %v1649 = vpack.c.b16 %v1639, %v1638
    %v1650 = vpack.c.b16 %v1641, %v1640
    %v1651 = vpack.c.b16 %v1643, %v1642
    %1660 = vmatprep.subr.bf16.mxu0 0
    %1661 = vmatpush1.bf16.msra.mxu0 %v1644
    %1662 = vmatprep.subr.bf16.mxu0 0
    %1663 = vmatpush1.bf16.msra.mxu0 %v1645
    %1664 = vmatprep.subr.bf16.mxu0 0
    %1665 = vmatpush1.bf16.msra.mxu0 %v1646
    %1666 = vmatprep.subr.bf16.mxu0 0
    %1667 = vmatpush1.bf16.msra.mxu0 %v1647
    %1668 = vmatprep.subr.bf16.mxu0 0
    %1669 = vmatpush1.bf16.msra.mxu0 %v1648
    %1670 = vmatprep.subr.bf16.mxu0 0
    %1671 = vmatpush1.bf16.msra.mxu0 %v1649
    %1672 = vmatprep.subr.bf16.mxu0 0
    %1673 = vmatpush1.bf16.msra.mxu0 %v1650
    %1674 = vmatprep.subr.bf16.mxu0 0
    %1675 = vmatpush1.bf16.msra.mxu0 %v1651
    %1676 = vmatprep.subr.bf16.mxu0 0
    %1677 = vmatpush1.bf16.msra.mxu0 0
    %1678 = vmatprep.subr.bf16.mxu0 0
    %1679 = vmatpush1.bf16.msra.mxu0 0
    %1680 = vmatprep.subr.bf16.mxu0 0
    %1681 = vmatpush1.bf16.msra.mxu0 0
    %1682 = vmatprep.subr.bf16.mxu0 0
    %1683 = vmatpush1.bf16.msra.mxu0 0
    %1684 = vmatprep.subr.bf16.mxu0 0
    %1685 = vmatpush1.bf16.msra.mxu0 0
    %1686 = vmatprep.subr.bf16.mxu0 0
    %1687 = vmatpush1.bf16.msra.mxu0 0
    %1688 = vmatprep.subr.bf16.mxu0 0
    %1689 = vmatpush1.bf16.msra.mxu0 0
    %1690 = vmatprep.subr.bf16.mxu0 0
    %1691 = vmatpush1.bf16.msra.mxu0 0
    %1692 = vmatprep.mubr.bf16.mxu0 0
    %1693 = vmatmul.mubr.bf16.gmra.mrb[0].mxu0 %v1611
    %v1694 = vpop.f32.mrb[0].mxu0
    %v1695 = vadd.f32 0.0, %v1694
    %v1696 = vpop.f32.mrb[0].mxu0
    %v1697 = vpop.f32.mrb[0].mxu0
    %v1698 = vadd.f32 0.0, %v1697
    %v1699 = vpop.f32.mrb[0].mxu0
    %1700 = vdwg.mxu0
    %v1717 = vunpack.c.l.b16 %v1563
    %v1718 = vunpack.c.l.b16 %v1564
    %v1719 = vunpack.c.l.b16 %v1565
    %v1720 = vunpack.c.l.b16 %v1566
    %v1721 = vunpack.c.l.b16 %v1567
    %v1722 = vunpack.c.l.b16 %v1568
    %v1723 = vunpack.c.l.b16 %v1569
    %v1724 = vunpack.c.l.b16 %v1570
    %v1725 = vunpack.c.l.b16 %v1571
    %v1726 = vunpack.c.l.b16 %v1572
    %v1727 = vunpack.c.l.b16 %v1573
    %v1728 = vunpack.c.l.b16 %v1574
    %v1729 = vunpack.c.l.b16 %v1575
    %v1730 = vunpack.c.l.b16 %v1576
    %v1731 = vunpack.c.l.b16 %v1577
    %v1732 = vunpack.c.l.b16 %v1578
    %v1733 = vpack.c.b16 %v1718, %v1717
    %v1734 = vpack.c.b16 %v1720, %v1719
    %v1735 = vpack.c.b16 %v1722, %v1721
    %v1736 = vpack.c.b16 %v1724, %v1723
    %v1737 = vpack.c.b16 %v1726, %v1725
    %v1738 = vpack.c.b16 %v1728, %v1727
    %v1739 = vpack.c.b16 %v1730, %v1729
    %v1740 = vpack.c.b16 %v1732, %v1731
    %1749 = vmatprep.subr.bf16.mxu0 0
    %1750 = vmatpush1.bf16.msra.mxu0 %v1733
    %1751 = vmatprep.subr.bf16.mxu0 0
    %1752 = vmatpush1.bf16.msra.mxu0 %v1734
    %1753 = vmatprep.subr.bf16.mxu0 0
    %1754 = vmatpush1.bf16.msra.mxu0 %v1735
    %1755 = vmatprep.subr.bf16.mxu0 0
    %1756 = vmatpush1.bf16.msra.mxu0 %v1736
    %1757 = vmatprep.subr.bf16.mxu0 0
    %1758 = vmatpush1.bf16.msra.mxu0 %v1737
    %1759 = vmatprep.subr.bf16.mxu0 0
    %1760 = vmatpush1.bf16.msra.mxu0 %v1738
    %1761 = vmatprep.subr.bf16.mxu0 0
    %1762 = vmatpush1.bf16.msra.mxu0 %v1739
    %1763 = vmatprep.subr.bf16.mxu0 0
    %1764 = vmatpush1.bf16.msra.mxu0 %v1740
    %1765 = vmatprep.subr.bf16.mxu0 0
    %1766 = vmatpush1.bf16.msra.mxu0 0
    %1767 = vmatprep.subr.bf16.mxu0 0
    %1768 = vmatpush1.bf16.msra.mxu0 0
    %1769 = vmatprep.subr.bf16.mxu0 0
    %1770 = vmatpush1.bf16.msra.mxu0 0
    %1771 = vmatprep.subr.bf16.mxu0 0
    %1772 = vmatpush1.bf16.msra.mxu0 0
    %1773 = vmatprep.subr.bf16.mxu0 0
    %1774 = vmatpush1.bf16.msra.mxu0 0
    %1775 = vmatprep.subr.bf16.mxu0 0
    %1776 = vmatpush1.bf16.msra.mxu0 0
    %1777 = vmatprep.subr.bf16.mxu0 0
    %1778 = vmatpush1.bf16.msra.mxu0 0
    %1779 = vmatprep.subr.bf16.mxu0 0
    %1780 = vmatpush1.bf16.msra.mxu0 0
    %1781 = vmatprep.mubr.bf16.mxu0 0
    %1782 = vmatmul.mubr.bf16.gmra.mrb[0].mxu0 %v1611
    %v1783 = vpop.f32.mrb[0].mxu0
    %v1784 = vadd.f32 0.0, %v1783
    %v1785 = vpop.f32.mrb[0].mxu0
    %v1786 = vpop.f32.mrb[0].mxu0
    %v1787 = vadd.f32 0.0, %v1786
    %v1788 = vpop.f32.mrb[0].mxu0
    %1789 = vdwg.mxu0
    %v1790 = vpack.c.bf16 %v1698, %v1695
    %v1791 = vpack.c.bf16 %v1787, %v1784
    %v1792 = vlaneseq
    %v1793 = vshrl.u32 %v1792, 7
    %v1794 = vsub.s32 6, %v1793
    %v1795 = vrot.slane %v34, %v1794
    %1796 = vmatprep.subr.bf16.mxu0 0
    %1797 = vmatpush1.bf16.msra.mxu0 %v1790
    %1798 = vmatprep.subr.bf16.mxu0 0
    %1799 = vmatpush1.bf16.msra.mxu0 %v1791
    %1800 = vmatprep.subr.bf16.mxu0 0
    %1801 = vmatpush1.bf16.msra.mxu0 0
    %1802 = vmatprep.subr.bf16.mxu0 0
    %1803 = vmatpush1.bf16.msra.mxu0 0
    %1804 = vmatprep.subr.bf16.mxu0 0
    %1805 = vmatpush1.bf16.msra.mxu0 0
    %1806 = vmatprep.subr.bf16.mxu0 0
    %1807 = vmatpush1.bf16.msra.mxu0 0
    %1808 = vmatprep.subr.bf16.mxu0 0
    %1809 = vmatpush1.bf16.msra.mxu0 0
    %1810 = vmatprep.subr.bf16.mxu0 0
    %1811 = vmatpush1.bf16.msra.mxu0 0
    %1812 = vmatprep.subr.bf16.mxu0 0
    %1813 = vmatpush1.bf16.msra.mxu0 0
    %1814 = vmatprep.subr.bf16.mxu0 0
    %1815 = vmatpush1.bf16.msra.mxu0 0
    %1816 = vmatprep.subr.bf16.mxu0 0
    %1817 = vmatpush1.bf16.msra.mxu0 0
    %1818 = vmatprep.subr.bf16.mxu0 0
    %1819 = vmatpush1.bf16.msra.mxu0 0
    %1820 = vmatprep.subr.bf16.mxu0 0
    %1821 = vmatpush1.bf16.msra.mxu0 0
    %1822 = vmatprep.subr.bf16.mxu0 0
    %1823 = vmatpush1.bf16.msra.mxu0 0
    %1824 = vmatprep.subr.bf16.mxu0 0
    %1825 = vmatpush1.bf16.msra.mxu0 0
    %1826 = vmatprep.subr.bf16.mxu0 0
    %1827 = vmatpush1.bf16.msra.mxu0 0
    %1828 = vmatprep.mubr.bf16.mxu0 0
    %1829 = vmatmul.mubr.bf16.gmra.mrb[0].mxu0 %v509
    %v1830 = vpop.f32.mrb[0].mxu0
    %v1831 = vadd.f32 %v1795, %v1830
    %v1832 = vpop.f32.mrb[0].mxu0
    %v1833 = vpop.f32.mrb[0].mxu0
    %v1834 = vadd.f32 %v1795, %v1833
    %v1835 = vpop.f32.mrb[0].mxu0
    %1836 = vmatprep.mubr.bf16.mxu0 0
    %1837 = vmatmul.mubr.bf16.gmra.mrb[0].mxu0 %v512
    %v1838 = vpop.f32.mrb[0].mxu0
    %v1839 = vadd.f32 %v1795, %v1838
    %v1840 = vpop.f32.mrb[0].mxu0
    %v1841 = vpop.f32.mrb[0].mxu0
    %v1842 = vadd.f32 %v1795, %v1841
    %v1843 = vpop.f32.mrb[0].mxu0
    %1844 = vmatprep.mubr.bf16.mxu0 0
    %1845 = vmatmul.mubr.bf16.gmra.mrb[0].mxu0 %v515
    %v1846 = vpop.f32.mrb[0].mxu0
    %v1847 = vadd.f32 %v1795, %v1846
    %v1848 = vpop.f32.mrb[0].mxu0
    %v1849 = vpop.f32.mrb[0].mxu0
    %v1850 = vadd.f32 %v1795, %v1849
    %v1851 = vpop.f32.mrb[0].mxu0
    %1852 = vmatprep.mubr.bf16.mxu0 0
    %1853 = vmatmul.mubr.bf16.gmra.mrb[0].mxu0 %v518
    %v1854 = vpop.f32.mrb[0].mxu0
    %v1855 = vadd.f32 %v1795, %v1854
    %v1856 = vpop.f32.mrb[0].mxu0
    %v1857 = vpop.f32.mrb[0].mxu0
    %v1858 = vadd.f32 %v1795, %v1857
    %v1859 = vpop.f32.mrb[0].mxu0
    %1860 = vdwg.mxu0
    %v1861 = vmax.f32 %v1831, 0.0
    %v1862 = vmax.f32 %v1834, 0.0
    %v1863 = vmax.f32 %v1839, 0.0
    %v1864 = vmax.f32 %v1842, 0.0
    %v1865 = vmax.f32 %v1847, 0.0
    %v1866 = vmax.f32 %v1850, 0.0
    %v1867 = vmax.f32 %v1855, 0.0
    %v1868 = vmax.f32 %v1858, 0.0
    %v1869 = vpack.c.bf16 %v1862, %v1861
    %v1870 = vpack.c.bf16 %v1864, %v1863
    %v1871 = vpack.c.bf16 %v1866, %v1865
    %v1872 = vpack.c.bf16 %v1868, %v1867
    %v1873 = vlaneseq
    %v1874 = vshrl.u32 %v1873, 7
    %v1875 = vsub.s32 7, %v1874
    %v1876 = vrot.slane %v34, %v1875
    %v1893 = vunpack.c.l.b16 %v1579
    %v1894 = vunpack.c.l.b16 %v1580
    %v1895 = vunpack.c.l.b16 %v1581
    %v1896 = vunpack.c.l.b16 %v1582
    %v1897 = vunpack.c.l.b16 %v1583
    %v1898 = vunpack.c.l.b16 %v1584
    %v1899 = vunpack.c.l.b16 %v1585
    %v1900 = vunpack.c.l.b16 %v1586
    %v1901 = vunpack.c.l.b16 %v1587
    %v1902 = vunpack.c.l.b16 %v1588
    %v1903 = vunpack.c.l.b16 %v1589
    %v1904 = vunpack.c.l.b16 %v1590
    %v1905 = vunpack.c.l.b16 %v1591
    %v1906 = vunpack.c.l.b16 %v1592
    %v1907 = vunpack.c.l.b16 %v1593
    %v1908 = vunpack.c.l.b16 %v1594
    %v1909 = vpack.c.b16 %v1894, %v1893
    %v1910 = vpack.c.b16 %v1896, %v1895
    %v1911 = vpack.c.b16 %v1898, %v1897
    %v1912 = vpack.c.b16 %v1900, %v1899
    %v1913 = vpack.c.b16 %v1902, %v1901
    %v1914 = vpack.c.b16 %v1904, %v1903
    %v1915 = vpack.c.b16 %v1906, %v1905
    %v1916 = vpack.c.b16 %v1908, %v1907
    %1925 = vmatprep.subr.bf16.mxu0 0
    %1926 = vmatpush1.bf16.msra.mxu0 %v1909
    %1927 = vmatprep.subr.bf16.mxu0 0
    %1928 = vmatpush1.bf16.msra.mxu0 %v1910
    %1929 = vmatprep.subr.bf16.mxu0 0
    %1930 = vmatpush1.bf16.msra.mxu0 %v1911
    %1931 = vmatprep.subr.bf16.mxu0 0
    %1932 = vmatpush1.bf16.msra.mxu0 %v1912
    %1933 = vmatprep.subr.bf16.mxu0 0
    %1934 = vmatpush1.bf16.msra.mxu0 %v1913
    %1935 = vmatprep.subr.bf16.mxu0 0
    %1936 = vmatpush1.bf16.msra.mxu0 %v1914
    %1937 = vmatprep.subr.bf16.mxu0 0
    %1938 = vmatpush1.bf16.msra.mxu0 %v1915
    %1939 = vmatprep.subr.bf16.mxu0 0
    %1940 = vmatpush1.bf16.msra.mxu0 %v1916
    %1941 = vmatprep.subr.bf16.mxu0 0
    %1942 = vmatpush1.bf16.msra.mxu0 0
    %1943 = vmatprep.subr.bf16.mxu0 0
    %1944 = vmatpush1.bf16.msra.mxu0 0
    %1945 = vmatprep.subr.bf16.mxu0 0
    %1946 = vmatpush1.bf16.msra.mxu0 0
    %1947 = vmatprep.subr.bf16.mxu0 0
    %1948 = vmatpush1.bf16.msra.mxu0 0
    %1949 = vmatprep.subr.bf16.mxu0 0
    %1950 = vmatpush1.bf16.msra.mxu0 0
    %1951 = vmatprep.subr.bf16.mxu0 0
    %1952 = vmatpush1.bf16.msra.mxu0 0
    %1953 = vmatprep.subr.bf16.mxu0 0
    %1954 = vmatpush1.bf16.msra.mxu0 0
    %1955 = vmatprep.subr.bf16.mxu0 0
    %1956 = vmatpush1.bf16.msra.mxu0 0
    %1957 = vmatprep.mubr.bf16.mxu0 0
    %1958 = vmatmul.mubr.bf16.gmra.mrb[0].mxu0 %v1869
    %v1959 = vpop.f32.mrb[0].mxu0
    %v1960 = vadd.f32 %v1876, %v1959
    %v1961 = vpop.f32.mrb[0].mxu0
    %v1962 = vpop.f32.mrb[0].mxu0
    %v1963 = vadd.f32 %v1876, %v1962
    %v1964 = vpop.f32.mrb[0].mxu0
    %1965 = vmatprep.mubr.bf16.mxu0 0
    %1966 = vmatmul.mubr.bf16.gmra.mrb[0].mxu0 %v1870
    %v1967 = vpop.f32.mrb[0].mxu0
    %v1968 = vadd.f32 %v1876, %v1967
    %v1969 = vpop.f32.mrb[0].mxu0
    %v1970 = vpop.f32.mrb[0].mxu0
    %v1971 = vadd.f32 %v1876, %v1970
    %v1972 = vpop.f32.mrb[0].mxu0
    %1973 = vmatprep.mubr.bf16.mxu0 0
    %1974 = vmatmul.mubr.bf16.gmra.mrb[0].mxu0 %v1871
    %v1975 = vpop.f32.mrb[0].mxu0
    %v1976 = vadd.f32 %v1876, %v1975
    %v1977 = vpop.f32.mrb[0].mxu0
    %v1978 = vpop.f32.mrb[0].mxu0
    %v1979 = vadd.f32 %v1876, %v1978
    %v1980 = vpop.f32.mrb[0].mxu0
    %1981 = vmatprep.mubr.bf16.mxu0 0
    %1982 = vmatmul.mubr.bf16.gmra.mrb[0].mxu0 %v1872
    %v1983 = vpop.f32.mrb[0].mxu0
    %v1984 = vadd.f32 %v1876, %v1983
    %v1985 = vpop.f32.mrb[0].mxu0
    %v1986 = vpop.f32.mrb[0].mxu0
    %v1987 = vadd.f32 %v1876, %v1986
    %v1988 = vpop.f32.mrb[0].mxu0
    %1989 = vdwg.mxu0
    %v1990 = vmax.f32 %v1960, 0.0
    %v1991 = vmax.f32 %v1963, 0.0
    %v1992 = vmax.f32 %v1968, 0.0
    %v1993 = vmax.f32 %v1971, 0.0
    %v1994 = vmax.f32 %v1976, 0.0
    %v1995 = vmax.f32 %v1979, 0.0
    %v1996 = vmax.f32 %v1984, 0.0
    %v1997 = vmax.f32 %v1987, 0.0
    %v1998 = vpack.c.bf16 %v1991, %v1990
    %v1999 = vpack.c.bf16 %v1993, %v1992
    %v2000 = vpack.c.bf16 %v1995, %v1994
    %v2001 = vpack.c.bf16 %v1997, %v1996
    %v2002 = vlaneseq
    %v2003 = vshrl.u32 %v2002, 7
    %v2004 = vsub.s32 0, %v2003
    %v2005 = vrot.slane %v35, %v2004
    %v2022 = vunpack.c.l.b16 %v1595
    %v2023 = vunpack.c.l.b16 %v1596
    %v2024 = vunpack.c.l.b16 %v1597
    %v2025 = vunpack.c.l.b16 %v1598
    %v2026 = vunpack.c.l.b16 %v1599
    %v2027 = vunpack.c.l.b16 %v1600
    %v2028 = vunpack.c.l.b16 %v1601
    %v2029 = vunpack.c.l.b16 %v1602
    %v2030 = vunpack.c.l.b16 %v1603
    %v2031 = vunpack.c.l.b16 %v1604
    %v2032 = vunpack.c.l.b16 %v1605
    %v2033 = vunpack.c.l.b16 %v1606
    %v2034 = vunpack.c.l.b16 %v1607
    %v2035 = vunpack.c.l.b16 %v1608
    %v2036 = vunpack.c.l.b16 %v1609
    %v2037 = vunpack.c.l.b16 %v1610
    %v2038 = vpack.c.b16 %v2023, %v2022
    %v2039 = vpack.c.b16 %v2025, %v2024
    %v2040 = vpack.c.b16 %v2027, %v2026
    %v2041 = vpack.c.b16 %v2029, %v2028
    %v2042 = vpack.c.b16 %v2031, %v2030
    %v2043 = vpack.c.b16 %v2033, %v2032
    %v2044 = vpack.c.b16 %v2035, %v2034
    %v2045 = vpack.c.b16 %v2037, %v2036
    %2054 = vmatprep.subr.bf16.mxu0 0
    %2055 = vmatpush1.bf16.msra.mxu0 %v2038
    %2056 = vmatprep.subr.bf16.mxu0 0
    %2057 = vmatpush1.bf16.msra.mxu0 %v2039
    %2058 = vmatprep.subr.bf16.mxu0 0
    %2059 = vmatpush1.bf16.msra.mxu0 %v2040
    %2060 = vmatprep.subr.bf16.mxu0 0
    %2061 = vmatpush1.bf16.msra.mxu0 %v2041
    %2062 = vmatprep.subr.bf16.mxu0 0
    %2063 = vmatpush1.bf16.msra.mxu0 %v2042
    %2064 = vmatprep.subr.bf16.mxu0 0
    %2065 = vmatpush1.bf16.msra.mxu0 %v2043
    %2066 = vmatprep.subr.bf16.mxu0 0
    %2067 = vmatpush1.bf16.msra.mxu0 %v2044
    %2068 = vmatprep.subr.bf16.mxu0 0
    %2069 = vmatpush1.bf16.msra.mxu0 %v2045
    %2070 = vmatprep.subr.bf16.mxu0 0
    %2071 = vmatpush1.bf16.msra.mxu0 0
    %2072 = vmatprep.subr.bf16.mxu0 0
    %2073 = vmatpush1.bf16.msra.mxu0 0
    %2074 = vmatprep.subr.bf16.mxu0 0
    %2075 = vmatpush1.bf16.msra.mxu0 0
    %2076 = vmatprep.subr.bf16.mxu0 0
    %2077 = vmatpush1.bf16.msra.mxu0 0
    %2078 = vmatprep.subr.bf16.mxu0 0
    %2079 = vmatpush1.bf16.msra.mxu0 0
    %2080 = vmatprep.subr.bf16.mxu0 0
    %2081 = vmatpush1.bf16.msra.mxu0 0
    %2082 = vmatprep.subr.bf16.mxu0 0
    %2083 = vmatpush1.bf16.msra.mxu0 0
    %2084 = vmatprep.subr.bf16.mxu0 0
    %2085 = vmatpush1.bf16.msra.mxu0 0
    %2086 = vmatprep.mubr.bf16.mxu0 0
    %2087 = vmatmul.mubr.bf16.gmra.mrb[0].mxu0 %v1998
    %v2088 = vpop.f32.mrb[0].mxu0
    %v2089 = vadd.f32 %v2005, %v2088
    %v2090 = vpop.f32.mrb[0].mxu0
    %v2091 = vpop.f32.mrb[0].mxu0
    %v2092 = vadd.f32 %v2005, %v2091
    %v2093 = vpop.f32.mrb[0].mxu0
    %2094 = vmatprep.mubr.bf16.mxu0 0
    %2095 = vmatmul.mubr.bf16.gmra.mrb[0].mxu0 %v1999
    %v2096 = vpop.f32.mrb[0].mxu0
    %v2097 = vadd.f32 %v2005, %v2096
    %v2098 = vpop.f32.mrb[0].mxu0
    %v2099 = vpop.f32.mrb[0].mxu0
    %v2100 = vadd.f32 %v2005, %v2099
    %v2101 = vpop.f32.mrb[0].mxu0
    %2102 = vmatprep.mubr.bf16.mxu0 0
    %2103 = vmatmul.mubr.bf16.gmra.mrb[0].mxu0 %v2000
    %v2104 = vpop.f32.mrb[0].mxu0
    %v2105 = vadd.f32 %v2005, %v2104
    %v2106 = vpop.f32.mrb[0].mxu0
    %v2107 = vpop.f32.mrb[0].mxu0
    %v2108 = vadd.f32 %v2005, %v2107
    %v2109 = vpop.f32.mrb[0].mxu0
    %2110 = vmatprep.mubr.bf16.mxu0 0
    %2111 = vmatmul.mubr.bf16.gmra.mrb[0].mxu0 %v2001
    %v2112 = vpop.f32.mrb[0].mxu0
    %v2113 = vadd.f32 %v2005, %v2112
    %v2114 = vpop.f32.mrb[0].mxu0
    %v2115 = vpop.f32.mrb[0].mxu0
    %v2116 = vadd.f32 %v2005, %v2115
    %v2117 = vpop.f32.mrb[0].mxu0
    %2118 = vdwg.mxu0
    %v2119 = vpack.c.bf16 %v2092, %v2089
    %v2120 = vpack.c.bf16 %v2100, %v2097
    %v2121 = vpack.c.bf16 %v2108, %v2105
    %v2122 = vpack.c.bf16 %v2116, %v2113
    %2123 = vmatprep.subr.bf16.mxu0 0
    %2124 = vmatpush1.bf16.msra.mxu0 %v2119
    %2125 = vmatprep.subr.bf16.mxu0 0
    %2126 = vmatpush1.bf16.msra.mxu0 %v2120
    %2127 = vmatprep.subr.bf16.mxu0 0
    %2128 = vmatpush1.bf16.msra.mxu0 %v2121
    %2129 = vmatprep.subr.bf16.mxu0 0
    %2130 = vmatpush1.bf16.msra.mxu0 %v2122
    %2131 = vmatprep.subr.bf16.mxu0 0
    %2132 = vmatpush1.bf16.msra.mxu0 0
    %2133 = vmatprep.subr.bf16.mxu0 0
    %2134 = vmatpush1.bf16.msra.mxu0 0
    %2135 = vmatprep.subr.bf16.mxu0 0
    %2136 = vmatpush1.bf16.msra.mxu0 0
    %2137 = vmatprep.subr.bf16.mxu0 0
    %2138 = vmatpush1.bf16.msra.mxu0 0
    %2139 = vmatprep.subr.bf16.mxu0 0
    %2140 = vmatpush1.bf16.msra.mxu0 0
    %2141 = vmatprep.subr.bf16.mxu0 0
    %2142 = vmatpush1.bf16.msra.mxu0 0
    %2143 = vmatprep.subr.bf16.mxu0 0
    %2144 = vmatpush1.bf16.msra.mxu0 0
    %2145 = vmatprep.subr.bf16.mxu0 0
    %2146 = vmatpush1.bf16.msra.mxu0 0
    %2147 = vmatprep.subr.bf16.mxu0 0
    %2148 = vmatpush1.bf16.msra.mxu0 0
    %2149 = vmatprep.subr.bf16.mxu0 0
    %2150 = vmatpush1.bf16.msra.mxu0 0
    %2151 = vmatprep.subr.bf16.mxu0 0
    %2152 = vmatpush1.bf16.msra.mxu0 0
    %2153 = vmatprep.subr.bf16.mxu0 0
    %2154 = vmatpush1.bf16.msra.mxu0 0
    %2155 = vmatprep.mubr.bf16.mxu0 0
    %2156 = vmatmul.mubr.bf16.gmra.mrb[0].mxu0 %v202
    %v2157 = vpop.f32.mrb[0].mxu0
    %v2158 = vadd.f32 0.0, %v2157
    %v2159 = vpop.f32.mrb[0].mxu0
    %v2160 = vpop.f32.mrb[0].mxu0
    %v2161 = vadd.f32 0.0, %v2160
    %v2162 = vpop.f32.mrb[0].mxu0
    %2163 = vmatprep.mubr.bf16.mxu0 0
    %2164 = vmatmul.mubr.bf16.gmra.mrb[0].mxu0 %v205
    %v2165 = vpop.f32.mrb[0].mxu0
    %v2166 = vpop.f32.mrb[0].mxu0
    %v2167 = vpop.f32.mrb[0].mxu0
    %v2168 = vpop.f32.mrb[0].mxu0
    %2169 = vdwg.mxu0
    %v2170 = vmul.f32 %v2158, %v905
    %v2171 = vmul.f32 %v2161, %v910
    %2172 = vst [vmem:[#allocation5] sm:$0xff] %v2170
    %2173 = vst [vmem:[#allocation5 + $0x8] sm:$0xff] %v2171
    // Predicated region
    $region22: #{tpu_custom_call.1} parent=1 // pred_check
      _
    $region23: #{tpu_custom_call.1} parent=1 // pred_check_branch
      %2175 = sbr.rel (0) target = $region25
    $region24: #{tpu_custom_call.1} parent=1 // pred_region
      %s2177 = ssub.s32 256, 256
      %2178 = vsyncadd [#allocation4], %s2177
      %s2179 = sshll.u32 [#allocation5], 4
      %s2180 = int_to_ptr.vmem [resolvable:$true] %s2179
      %2185 = dma.vmem_to_hbm [thread:$0]  %s2180, 256, %s4, [#allocation4], 128, 128, 8
    $region25: #{tpu_custom_call.1} parent=1 // pred_fallthru
      _
    // Predicated region
    $region26: #{tpu_custom_call.1} parent=1 // pred_check
      _
    $region27: #{tpu_custom_call.1} parent=1 // pred_check_branch
      %2187 = sbr.rel (0) target = $region29
    $region28: #{tpu_custom_call.1} parent=1 // pred_region
      %2188 = dma.done [#allocation4], 256
    $region29: #{tpu_custom_call.1} parent=1 // pred_fallthru
      _
    %2189 = vsyncpa [#allocation3], 1
    %2190 = vsyncpa [#allocation4], 1

</llo_original>
